<compile_context>
chip_gen: v7x
topology: tpu7x:2x2x1
jax: 0.10.0
libtpu: 0.0.40
codegen_flags: <defaults>
</compile_context>

<pallas_src>
import functools

import numpy as np
import jax
import jax.numpy as jnp
from jax.experimental import pallas as pl
from jax.experimental.pallas import tpu as pltpu

EPS = 1e-5


# ------------------------- wrapper-side weight plumbing -------------------------

def _toeplitz_conv_weights(w, W):
    """w: (3, 3, Cin, Cout) HWIO -> (3, W*Cin, W*Cout) band matrices.

    Wmat[kh, r*Cin + ci, q*Cout + co] = w[kh, r - q + 1, ci, co]  if |r - q| <= 1 else 0
    so that, with p the H-only zero-padded lane-dense input (H+2, W*Cin),
        out_row[h] = sum_kh  p[h + kh, :] @ Wmat[kh]
    is exactly the 3x3 stride-1 zero-pad(1) convolution in (H, W*Cout) layout.
    (The W-direction zero padding is realized by the dropped out-of-band terms.)
    """
    C_in, C_out = w.shape[2], w.shape[3]
    S = np.zeros((3, W, W), np.float32)
    for kw in range(3):
        for q in range(W):
            r = q + kw - 1
            if 0 <= r < W:
                S[kw, r, q] = 1.0
    wm = jnp.einsum("krw,hkio->hriwo", jnp.asarray(S), w.astype(jnp.float32))
    return wm.reshape(3, W * C_in, W * C_out)


def _channel_fold_matrix(W, C):
    """(W*C, W*C) matrix M with M[i, j] = 1 iff i % C == j % C.

    (row_vec @ M)[j] = sum over all w of row_vec[w*C + (j % C)], i.e. it folds a
    lane-dense (1, W*C) spatial sum into per-channel sums, already broadcast back
    to every (w, c) lane position.
    """
    lanes = np.arange(W * C)
    return jnp.asarray((lanes[:, None] % C == lanes[None, :] % C).astype(np.float32))


# ----------------------------------- kernel -------------------------------------

def _res_chain_kernel(x_ref, wmat_ref, fold_ref, out_ref, *, num_blocks):
    """Fused ResBlocks chain for one batch element.

    x_ref:    (H, W*C)                     lane-dense input tile
    wmat_ref: (2*num_blocks, 3, W*C, W*C)  Toeplitz-expanded conv weights
    fold_ref: (W*C, W*C)                   channel-fold matrix for InstanceNorm stats
    out_ref:  (H, W*C)                     lane-dense output tile
    """
    H, lanes = x_ref.shape
    inv_n = 1.0 / float(H * (lanes // 1))  # placeholder, fixed below
    # n = H * W ; but W*C lanes hold W spatial positions * C channels -> n = H * W
    # fold_ref sums over W positions per channel, sublane sum handles H.
    # Recover W from fold matrix usage is not needed: n = H * W = H * lanes / C,
    # and the fold matmul already sums over W, so dividing by (H * W) is correct:
    #   mean_c = (sum_h sum_w acc) / (H * W)
    # We pass n via closure-free arithmetic: lanes = W*C, and the fold matrix has
    # exactly W ones per row, so n = H * W = H * (#ones per fold row). Simpler: the
    # wrapper guarantees inv_n below.
    del inv_n

    fold = fold_ref[...]                          # (lanes, lanes)
    n_spatial = H * int(jnp.shape(fold)[0]) // 1  # not used; see _N_SPATIAL closure

    cur = x_ref[...].astype(jnp.float32)          # (H, lanes)
    zrow = jnp.zeros((1, lanes), jnp.float32)

    def conv_in(val, layer_idx, relu, inv_n):
        # in-kernel zero padding along H (W padding lives in the Toeplitz weights)
        p = jnp.concatenate([zrow, val, zrow], axis=0)        # (H+2, lanes)
        acc = jnp.zeros((H, lanes), jnp.float32)
        for kh in range(3):
            acc = acc + jnp.dot(p[kh:kh + H, :], wmat_ref[layer_idx, kh],
                                preferred_element_type=jnp.float32)
        # InstanceNorm2d(affine=False), biased variance, per-channel over H*W.
        s = jnp.sum(acc, axis=0, keepdims=True)               # (1, lanes)
        mean = jnp.dot(s, fold, preferred_element_type=jnp.float32) * inv_n
        d = acc - mean
        sq = jnp.sum(d * d, axis=0, keepdims=True)            # (1, lanes)
        var = jnp.dot(sq, fold, preferred_element_type=jnp.float32) * inv_n
        y = d * jax.lax.rsqrt(var + EPS)
        if relu:
            y = jnp.maximum(y, 0.0)
        return y

    # inv_n = 1 / (H * W); the fold matrix has exactly W ones per row.
    # The wrapper builds fold so that W = lanes // C; it also passes H*W implicitly
    # through the shapes. Compute it here from the first wmat band structure is
    # overkill -- the wrapper simply bakes W into `num_spatial` below via a constant.
    # (kept as a traced-constant-free Python float)
    num_spatial = _res_chain_kernel._n_spatial    # set by the wrapper before tracing
    inv_n = 1.0 / float(num_spatial)

    for blk in range(num_blocks):
        residual = cur
        h1 = conv_in(cur, 2 * blk, relu=True, inv_n=inv_n)
        cur = conv_in(h1, 2 * blk + 1, relu=False, inv_n=inv_n) + residual

    out_ref[...] = cur.astype(out_ref.dtype)      # lane-dense (H, W*C) unmasked store


# ----------------------------------- wrapper -------------------------------------

def res_blocks(x, all_params):
    """x: (B, H, W, C) NHWC.  all_params: list of (w1, b1, w2, b2), HWIO weights.

    Note: ResBlocks.forward computes self.model(x) twice and returns the second,
    which (the model being pure in eval) equals a single application.
    Conv biases are dropped in-kernel: a per-channel constant is exactly canceled
    by InstanceNorm2d(affine=False).
    """
    B, H, W, C = x.shape
    L = len(all_params)

    wmats = []
    for (w1, _b1, w2, _b2) in all_params:
        wmats.append(_toeplitz_conv_weights(w1, W))
        wmats.append(_toeplitz_conv_weights(w2, W))
    wmat = jnp.stack(wmats, axis=0)                 # (2L, 3, W*C, W*C)
    fold = _channel_fold_matrix(W, C)               # (W*C, W*C)

    x_flat = x.reshape(B, H, W * C)                 # contiguous, pure layout

    _res_chain_kernel._n_spatial = H * W            # static constant for the trace
    kernel = functools.partial(_res_chain_kernel, num_blocks=L)

    out = pl.pallas_call(
        kernel,
        out_shape=jax.ShapeDtypeStruct((B, H, W * C), x.dtype),
        grid=(B,),
        in_specs=[
            pl.BlockSpec((None, H, W * C), lambda b: (b, 0, 0)),
            pl.BlockSpec((2 * L, 3, W * C, W * C), lambda b: (0, 0, 0, 0)),
            pl.BlockSpec((W * C, W * C), lambda b: (0, 0)),
        ],
        out_specs=pl.BlockSpec((None, H, W * C), lambda b: (b, 0, 0)),
        compiler_params=pltpu.CompilerParams(
            dimension_semantics=("parallel",)),     # v7x: shard batch over 2 TCs
    )(x_flat, wmat, fold)
    return out.reshape(B, H, W, C)


# ------------------------------ pure-JAX reference --------------------------------

def _conv_block_ref(x, w, b, apply_relu):
    y = jax.lax.conv_general_dilated(
        x, w, window_strides=(1, 1), padding="SAME",
        dimension_numbers=("NHWC", "HWIO", "NHWC")) + b[None, None, None, :]
    mean = y.mean(axis=(1, 2), keepdims=True)
    var = ((y - mean) ** 2).mean(axis=(1, 2), keepdims=True)
    y = (y - mean) * jax.lax.rsqrt(var + EPS)
    if apply_relu:
        y = jnp.maximum(y, 0.0)
    return y


def _res_blocks_ref(x, all_params):
    for (w1, b1, w2, b2) in all_params:
        y = _conv_block_ref(x, w1, b1, True)
        x = _conv_block_ref(y, w2, b2, False) + x
    return x


# ------------------------------------ main -----------------------------------------

if __name__ == "__main__":
    num_blocks = 2
    B, H, W, C = 2, 16, 16, 8   # dim = 8 channels; W*C = 128 lanes (lane-dense)

    key = jax.random.PRNGKey(0)
    key, kx = jax.random.split(key)
    x = jax.random.normal(kx, (B, H, W, C), dtype=jnp.float32)

    # Deterministic synthetic parameters (not a checkpoint).
    all_params = []
    for _ in range(num_blocks):
        key, k1, k2, k3, k4 = jax.random.split(key, 5)
        scale = 1.0 / jnp.sqrt(9.0 * C)
        w1 = jax.random.normal(k1, (3, 3, C, C), jnp.float32) * scale
        b1 = jax.random.normal(k2, (C,), jnp.float32) * 0.1
        w2 = jax.random.normal(k3, (3, 3, C, C), jnp.float32) * scale
        b2 = jax.random.normal(k4, (C,), jnp.float32) * 0.1
        all_params.append((w1, b1, w2, b2))

    out = jax.block_until_ready(res_blocks(x, all_params))
    ref = jax.block_until_ready(_res_blocks_ref(x, all_params))

    assert out.shape == (B, H, W, C)
    assert jnp.allclose(out, ref, atol=1e-4, rtol=1e-4), "Pallas output mismatch vs reference"

    print("KERNEL_OK")
</pallas_src>

<mosaic_0001>
module attributes {stable_mosaic.version = 11 : i64} {
  func.func @_res_chain_kernel(%arg0: i32, %arg1: memref<1x16x128xf32, #tpu.memory_space<vmem>>, %arg2: memref<4x3x128x128xf32, #tpu.memory_space<vmem>>, %arg3: memref<128x128xf32, #tpu.memory_space<vmem>>, %arg4: memref<1x16x128xf32, #tpu.memory_space<vmem>>) attributes {dimension_semantics = [#tpu.dimension_semantics<parallel>], iteration_bounds = array<i64: 2>, scalar_prefetch = 0 : i64, scratch_operands = 0 : i64, tpu.core_type = #tpu.core_type<tc>, window_params = [{transform_indices = @transform_0, window_bounds = array<i64: 1, 16, 128>}, {pipeline_mode = #tpu.pipeline_mode<synchronous>, transform_indices = @transform_1, window_bounds = array<i64: 4, 3, 128, 128>}, {pipeline_mode = #tpu.pipeline_mode<synchronous>, transform_indices = @transform_2, window_bounds = array<i64: 128, 128>}, {transform_indices = @transform_3, window_bounds = array<i64: 1, 16, 128>}]} {
    %c0 = arith.constant 0 : index
    %c0_0 = arith.constant 0 : index
    %0 = vector.load %arg3[%c0, %c0_0] : memref<128x128xf32, #tpu.memory_space<vmem>>, vector<128x128xf32>
    %c0_1 = arith.constant 0 : index
    %c0_2 = arith.constant 0 : index
    %c0_3 = arith.constant 0 : index
    %1 = vector.load %arg1[%c0_1, %c0_2, %c0_3] : memref<1x16x128xf32, #tpu.memory_space<vmem>>, vector<1x16x128xf32>
    %2 = vector.shape_cast %1 : vector<1x16x128xf32> to vector<16x128xf32>
    %cst = arith.constant 0.000000e+00 : f32
    %3 = vector.broadcast %cst : f32 to vector<1x128xf32>
    %4 = tpu.concatenate %3, %2, %3 in 0 : vector<1x128xf32>, vector<16x128xf32>, vector<1x128xf32> -> vector<18x128xf32>
    %cst_4 = arith.constant 0.000000e+00 : f32
    %5 = vector.broadcast %cst_4 : f32 to vector<16x128xf32>
    %6 = vector.extract_strided_slice %4 {offsets = [0, 0], sizes = [16, 128], strides = [1, 1]} : vector<18x128xf32> to vector<16x128xf32>
    %c0_5 = arith.constant 0 : index
    %c0_6 = arith.constant 0 : index
    %c0_7 = arith.constant 0 : index
    %c0_8 = arith.constant 0 : index
    %7 = vector.load %arg2[%c0_5, %c0_6, %c0_7, %c0_8] : memref<4x3x128x128xf32, #tpu.memory_space<vmem>>, vector<1x1x128x128xf32>
    %8 = vector.shape_cast %7 : vector<1x1x128x128xf32> to vector<128x128xf32>
    %cst_9 = arith.constant dense<0.000000e+00> : vector<16x128xf32>
    %9 = tpu.matmul %6, %8, %cst_9 {dimension_numbers = #tpu.dot_dimension_numbers<[1], [0], [0], [1], [0, 0, 1, 1], [], []>} : vector<16x128xf32>, vector<128x128xf32>, vector<16x128xf32> -> vector<16x128xf32>
    %10 = arith.addf %5, %9 : vector<16x128xf32>
    %11 = vector.extract_strided_slice %4 {offsets = [1, 0], sizes = [16, 128], strides = [1, 1]} : vector<18x128xf32> to vector<16x128xf32>
    %c0_10 = arith.constant 0 : index
    %c1 = arith.constant 1 : index
    %c0_11 = arith.constant 0 : index
    %c0_12 = arith.constant 0 : index
    %12 = vector.load %arg2[%c0_10, %c1, %c0_11, %c0_12] : memref<4x3x128x128xf32, #tpu.memory_space<vmem>>, vector<1x1x128x128xf32>
    %13 = vector.shape_cast %12 : vector<1x1x128x128xf32> to vector<128x128xf32>
    %cst_13 = arith.constant dense<0.000000e+00> : vector<16x128xf32>
    %14 = tpu.matmul %11, %13, %cst_13 {dimension_numbers = #tpu.dot_dimension_numbers<[1], [0], [0], [1], [0, 0, 1, 1], [], []>} : vector<16x128xf32>, vector<128x128xf32>, vector<16x128xf32> -> vector<16x128xf32>
    %15 = arith.addf %10, %14 : vector<16x128xf32>
    %16 = vector.extract_strided_slice %4 {offsets = [2, 0], sizes = [16, 128], strides = [1, 1]} : vector<18x128xf32> to vector<16x128xf32>
    %c0_14 = arith.constant 0 : index
    %c2 = arith.constant 2 : index
    %c0_15 = arith.constant 0 : index
    %c0_16 = arith.constant 0 : index
    %17 = vector.load %arg2[%c0_14, %c2, %c0_15, %c0_16] : memref<4x3x128x128xf32, #tpu.memory_space<vmem>>, vector<1x1x128x128xf32>
    %18 = vector.shape_cast %17 : vector<1x1x128x128xf32> to vector<128x128xf32>
    %cst_17 = arith.constant dense<0.000000e+00> : vector<16x128xf32>
    %19 = tpu.matmul %16, %18, %cst_17 {dimension_numbers = #tpu.dot_dimension_numbers<[1], [0], [0], [1], [0, 0, 1, 1], [], []>} : vector<16x128xf32>, vector<128x128xf32>, vector<16x128xf32> -> vector<16x128xf32>
    %20 = arith.addf %15, %19 : vector<16x128xf32>
    %cst_18 = arith.constant dense<0.000000e+00> : vector<128xf32>
    %21 = vector.multi_reduction <add>, %20, %cst_18 [0] : vector<16x128xf32> to vector<128xf32>
    %22 = vector.shape_cast %21 : vector<128xf32> to vector<1x128xf32>
    %cst_19 = arith.constant dense<0.000000e+00> : vector<1x128xf32>
    %23 = tpu.matmul %22, %0, %cst_19 {dimension_numbers = #tpu.dot_dimension_numbers<[1], [0], [0], [1], [0, 0, 1, 1], [], []>} : vector<1x128xf32>, vector<128x128xf32>, vector<1x128xf32> -> vector<1x128xf32>
    %cst_20 = arith.constant 3.906250e-03 : f32
    %24 = vector.broadcast %cst_20 : f32 to vector<1x128xf32>
    %25 = arith.mulf %23, %24 : vector<1x128xf32>
    %26 = vector.broadcast %25 : vector<1x128xf32> to vector<16x128xf32>
    %27 = arith.subf %20, %26 : vector<16x128xf32>
    %28 = arith.mulf %27, %27 : vector<16x128xf32>
    %cst_21 = arith.constant dense<0.000000e+00> : vector<128xf32>
    %29 = vector.multi_reduction <add>, %28, %cst_21 [0] : vector<16x128xf32> to vector<128xf32>
    %30 = vector.shape_cast %29 : vector<128xf32> to vector<1x128xf32>
    %cst_22 = arith.constant dense<0.000000e+00> : vector<1x128xf32>
    %31 = tpu.matmul %30, %0, %cst_22 {dimension_numbers = #tpu.dot_dimension_numbers<[1], [0], [0], [1], [0, 0, 1, 1], [], []>} : vector<1x128xf32>, vector<128x128xf32>, vector<1x128xf32> -> vector<1x128xf32>
    %cst_23 = arith.constant 3.906250e-03 : f32
    %32 = vector.broadcast %cst_23 : f32 to vector<1x128xf32>
    %33 = arith.mulf %31, %32 : vector<1x128xf32>
    %cst_24 = arith.constant 9.99999974E-6 : f32
    %34 = vector.broadcast %cst_24 : f32 to vector<1x128xf32>
    %35 = arith.addf %33, %34 : vector<1x128xf32>
    %36 = math.rsqrt %35 : vector<1x128xf32>
    %37 = vector.broadcast %36 : vector<1x128xf32> to vector<16x128xf32>
    %38 = arith.mulf %27, %37 : vector<16x128xf32>
    %cst_25 = arith.constant 0.000000e+00 : f32
    %39 = vector.broadcast %cst_25 : f32 to vector<16x128xf32>
    %40 = arith.maximumf %38, %39 : vector<16x128xf32>
    %41 = tpu.concatenate %3, %40, %3 in 0 : vector<1x128xf32>, vector<16x128xf32>, vector<1x128xf32> -> vector<18x128xf32>
    %cst_26 = arith.constant 0.000000e+00 : f32
    %42 = vector.broadcast %cst_26 : f32 to vector<16x128xf32>
    %43 = vector.extract_strided_slice %41 {offsets = [0, 0], sizes = [16, 128], strides = [1, 1]} : vector<18x128xf32> to vector<16x128xf32>
    %c1_27 = arith.constant 1 : index
    %c0_28 = arith.constant 0 : index
    %c0_29 = arith.constant 0 : index
    %c0_30 = arith.constant 0 : index
    %44 = vector.load %arg2[%c1_27, %c0_28, %c0_29, %c0_30] : memref<4x3x128x128xf32, #tpu.memory_space<vmem>>, vector<1x1x128x128xf32>
    %45 = vector.shape_cast %44 : vector<1x1x128x128xf32> to vector<128x128xf32>
    %cst_31 = arith.constant dense<0.000000e+00> : vector<16x128xf32>
    %46 = tpu.matmul %43, %45, %cst_31 {dimension_numbers = #tpu.dot_dimension_numbers<[1], [0], [0], [1], [0, 0, 1, 1], [], []>} : vector<16x128xf32>, vector<128x128xf32>, vector<16x128xf32> -> vector<16x128xf32>
    %47 = arith.addf %42, %46 : vector<16x128xf32>
    %48 = vector.extract_strided_slice %41 {offsets = [1, 0], sizes = [16, 128], strides = [1, 1]} : vector<18x128xf32> to vector<16x128xf32>
    %c1_32 = arith.constant 1 : index
    %c1_33 = arith.constant 1 : index
    %c0_34 = arith.constant 0 : index
    %c0_35 = arith.constant 0 : index
    %49 = vector.load %arg2[%c1_32, %c1_33, %c0_34, %c0_35] : memref<4x3x128x128xf32, #tpu.memory_space<vmem>>, vector<1x1x128x128xf32>
    %50 = vector.shape_cast %49 : vector<1x1x128x128xf32> to vector<128x128xf32>
    %cst_36 = arith.constant dense<0.000000e+00> : vector<16x128xf32>
    %51 = tpu.matmul %48, %50, %cst_36 {dimension_numbers = #tpu.dot_dimension_numbers<[1], [0], [0], [1], [0, 0, 1, 1], [], []>} : vector<16x128xf32>, vector<128x128xf32>, vector<16x128xf32> -> vector<16x128xf32>
    %52 = arith.addf %47, %51 : vector<16x128xf32>
    %53 = vector.extract_strided_slice %41 {offsets = [2, 0], sizes = [16, 128], strides = [1, 1]} : vector<18x128xf32> to vector<16x128xf32>
    %c1_37 = arith.constant 1 : index
    %c2_38 = arith.constant 2 : index
    %c0_39 = arith.constant 0 : index
    %c0_40 = arith.constant 0 : index
    %54 = vector.load %arg2[%c1_37, %c2_38, %c0_39, %c0_40] : memref<4x3x128x128xf32, #tpu.memory_space<vmem>>, vector<1x1x128x128xf32>
    %55 = vector.shape_cast %54 : vector<1x1x128x128xf32> to vector<128x128xf32>
    %cst_41 = arith.constant dense<0.000000e+00> : vector<16x128xf32>
    %56 = tpu.matmul %53, %55, %cst_41 {dimension_numbers = #tpu.dot_dimension_numbers<[1], [0], [0], [1], [0, 0, 1, 1], [], []>} : vector<16x128xf32>, vector<128x128xf32>, vector<16x128xf32> -> vector<16x128xf32>
    %57 = arith.addf %52, %56 : vector<16x128xf32>
    %cst_42 = arith.constant dense<0.000000e+00> : vector<128xf32>
    %58 = vector.multi_reduction <add>, %57, %cst_42 [0] : vector<16x128xf32> to vector<128xf32>
    %59 = vector.shape_cast %58 : vector<128xf32> to vector<1x128xf32>
    %cst_43 = arith.constant dense<0.000000e+00> : vector<1x128xf32>
    %60 = tpu.matmul %59, %0, %cst_43 {dimension_numbers = #tpu.dot_dimension_numbers<[1], [0], [0], [1], [0, 0, 1, 1], [], []>} : vector<1x128xf32>, vector<128x128xf32>, vector<1x128xf32> -> vector<1x128xf32>
    %cst_44 = arith.constant 3.906250e-03 : f32
    %61 = vector.broadcast %cst_44 : f32 to vector<1x128xf32>
    %62 = arith.mulf %60, %61 : vector<1x128xf32>
    %63 = vector.broadcast %62 : vector<1x128xf32> to vector<16x128xf32>
    %64 = arith.subf %57, %63 : vector<16x128xf32>
    %65 = arith.mulf %64, %64 : vector<16x128xf32>
    %cst_45 = arith.constant dense<0.000000e+00> : vector<128xf32>
    %66 = vector.multi_reduction <add>, %65, %cst_45 [0] : vector<16x128xf32> to vector<128xf32>
    %67 = vector.shape_cast %66 : vector<128xf32> to vector<1x128xf32>
    %cst_46 = arith.constant dense<0.000000e+00> : vector<1x128xf32>
    %68 = tpu.matmul %67, %0, %cst_46 {dimension_numbers = #tpu.dot_dimension_numbers<[1], [0], [0], [1], [0, 0, 1, 1], [], []>} : vector<1x128xf32>, vector<128x128xf32>, vector<1x128xf32> -> vector<1x128xf32>
    %cst_47 = arith.constant 3.906250e-03 : f32
    %69 = vector.broadcast %cst_47 : f32 to vector<1x128xf32>
    %70 = arith.mulf %68, %69 : vector<1x128xf32>
    %cst_48 = arith.constant 9.99999974E-6 : f32
    %71 = vector.broadcast %cst_48 : f32 to vector<1x128xf32>
    %72 = arith.addf %70, %71 : vector<1x128xf32>
    %73 = math.rsqrt %72 : vector<1x128xf32>
    %74 = vector.broadcast %73 : vector<1x128xf32> to vector<16x128xf32>
    %75 = arith.mulf %64, %74 : vector<16x128xf32>
    %76 = arith.addf %75, %2 : vector<16x128xf32>
    %77 = tpu.concatenate %3, %76, %3 in 0 : vector<1x128xf32>, vector<16x128xf32>, vector<1x128xf32> -> vector<18x128xf32>
    %cst_49 = arith.constant 0.000000e+00 : f32
    %78 = vector.broadcast %cst_49 : f32 to vector<16x128xf32>
    %79 = vector.extract_strided_slice %77 {offsets = [0, 0], sizes = [16, 128], strides = [1, 1]} : vector<18x128xf32> to vector<16x128xf32>
    %c2_50 = arith.constant 2 : index
    %c0_51 = arith.constant 0 : index
    %c0_52 = arith.constant 0 : index
    %c0_53 = arith.constant 0 : index
    %80 = vector.load %arg2[%c2_50, %c0_51, %c0_52, %c0_53] : memref<4x3x128x128xf32, #tpu.memory_space<vmem>>, vector<1x1x128x128xf32>
    %81 = vector.shape_cast %80 : vector<1x1x128x128xf32> to vector<128x128xf32>
    %cst_54 = arith.constant dense<0.000000e+00> : vector<16x128xf32>
    %82 = tpu.matmul %79, %81, %cst_54 {dimension_numbers = #tpu.dot_dimension_numbers<[1], [0], [0], [1], [0, 0, 1, 1], [], []>} : vector<16x128xf32>, vector<128x128xf32>, vector<16x128xf32> -> vector<16x128xf32>
    %83 = arith.addf %78, %82 : vector<16x128xf32>
    %84 = vector.extract_strided_slice %77 {offsets = [1, 0], sizes = [16, 128], strides = [1, 1]} : vector<18x128xf32> to vector<16x128xf32>
    %c2_55 = arith.constant 2 : index
    %c1_56 = arith.constant 1 : index
    %c0_57 = arith.constant 0 : index
    %c0_58 = arith.constant 0 : index
    %85 = vector.load %arg2[%c2_55, %c1_56, %c0_57, %c0_58] : memref<4x3x128x128xf32, #tpu.memory_space<vmem>>, vector<1x1x128x128xf32>
    %86 = vector.shape_cast %85 : vector<1x1x128x128xf32> to vector<128x128xf32>
    %cst_59 = arith.constant dense<0.000000e+00> : vector<16x128xf32>
    %87 = tpu.matmul %84, %86, %cst_59 {dimension_numbers = #tpu.dot_dimension_numbers<[1], [0], [0], [1], [0, 0, 1, 1], [], []>} : vector<16x128xf32>, vector<128x128xf32>, vector<16x128xf32> -> vector<16x128xf32>
    %88 = arith.addf %83, %87 : vector<16x128xf32>
    %89 = vector.extract_strided_slice %77 {offsets = [2, 0], sizes = [16, 128], strides = [1, 1]} : vector<18x128xf32> to vector<16x128xf32>
    %c2_60 = arith.constant 2 : index
    %c2_61 = arith.constant 2 : index
    %c0_62 = arith.constant 0 : index
    %c0_63 = arith.constant 0 : index
    %90 = vector.load %arg2[%c2_60, %c2_61, %c0_62, %c0_63] : memref<4x3x128x128xf32, #tpu.memory_space<vmem>>, vector<1x1x128x128xf32>
    %91 = vector.shape_cast %90 : vector<1x1x128x128xf32> to vector<128x128xf32>
    %cst_64 = arith.constant dense<0.000000e+00> : vector<16x128xf32>
    %92 = tpu.matmul %89, %91, %cst_64 {dimension_numbers = #tpu.dot_dimension_numbers<[1], [0], [0], [1], [0, 0, 1, 1], [], []>} : vector<16x128xf32>, vector<128x128xf32>, vector<16x128xf32> -> vector<16x128xf32>
    %93 = arith.addf %88, %92 : vector<16x128xf32>
    %cst_65 = arith.constant dense<0.000000e+00> : vector<128xf32>
    %94 = vector.multi_reduction <add>, %93, %cst_65 [0] : vector<16x128xf32> to vector<128xf32>
    %95 = vector.shape_cast %94 : vector<128xf32> to vector<1x128xf32>
    %cst_66 = arith.constant dense<0.000000e+00> : vector<1x128xf32>
    %96 = tpu.matmul %95, %0, %cst_66 {dimension_numbers = #tpu.dot_dimension_numbers<[1], [0], [0], [1], [0, 0, 1, 1], [], []>} : vector<1x128xf32>, vector<128x128xf32>, vector<1x128xf32> -> vector<1x128xf32>
    %cst_67 = arith.constant 3.906250e-03 : f32
    %97 = vector.broadcast %cst_67 : f32 to vector<1x128xf32>
    %98 = arith.mulf %96, %97 : vector<1x128xf32>
    %99 = vector.broadcast %98 : vector<1x128xf32> to vector<16x128xf32>
    %100 = arith.subf %93, %99 : vector<16x128xf32>
    %101 = arith.mulf %100, %100 : vector<16x128xf32>
    %cst_68 = arith.constant dense<0.000000e+00> : vector<128xf32>
    %102 = vector.multi_reduction <add>, %101, %cst_68 [0] : vector<16x128xf32> to vector<128xf32>
    %103 = vector.shape_cast %102 : vector<128xf32> to vector<1x128xf32>
    %cst_69 = arith.constant dense<0.000000e+00> : vector<1x128xf32>
    %104 = tpu.matmul %103, %0, %cst_69 {dimension_numbers = #tpu.dot_dimension_numbers<[1], [0], [0], [1], [0, 0, 1, 1], [], []>} : vector<1x128xf32>, vector<128x128xf32>, vector<1x128xf32> -> vector<1x128xf32>
    %cst_70 = arith.constant 3.906250e-03 : f32
    %105 = vector.broadcast %cst_70 : f32 to vector<1x128xf32>
    %106 = arith.mulf %104, %105 : vector<1x128xf32>
    %cst_71 = arith.constant 9.99999974E-6 : f32
    %107 = vector.broadcast %cst_71 : f32 to vector<1x128xf32>
    %108 = arith.addf %106, %107 : vector<1x128xf32>
    %109 = math.rsqrt %108 : vector<1x128xf32>
    %110 = vector.broadcast %109 : vector<1x128xf32> to vector<16x128xf32>
    %111 = arith.mulf %100, %110 : vector<16x128xf32>
    %cst_72 = arith.constant 0.000000e+00 : f32
    %112 = vector.broadcast %cst_72 : f32 to vector<16x128xf32>
    %113 = arith.maximumf %111, %112 : vector<16x128xf32>
    %114 = tpu.concatenate %3, %113, %3 in 0 : vector<1x128xf32>, vector<16x128xf32>, vector<1x128xf32> -> vector<18x128xf32>
    %cst_73 = arith.constant 0.000000e+00 : f32
    %115 = vector.broadcast %cst_73 : f32 to vector<16x128xf32>
    %116 = vector.extract_strided_slice %114 {offsets = [0, 0], sizes = [16, 128], strides = [1, 1]} : vector<18x128xf32> to vector<16x128xf32>
    %c3 = arith.constant 3 : index
    %c0_74 = arith.constant 0 : index
    %c0_75 = arith.constant 0 : index
    %c0_76 = arith.constant 0 : index
    %117 = vector.load %arg2[%c3, %c0_74, %c0_75, %c0_76] : memref<4x3x128x128xf32, #tpu.memory_space<vmem>>, vector<1x1x128x128xf32>
    %118 = vector.shape_cast %117 : vector<1x1x128x128xf32> to vector<128x128xf32>
    %cst_77 = arith.constant dense<0.000000e+00> : vector<16x128xf32>
    %119 = tpu.matmul %116, %118, %cst_77 {dimension_numbers = #tpu.dot_dimension_numbers<[1], [0], [0], [1], [0, 0, 1, 1], [], []>} : vector<16x128xf32>, vector<128x128xf32>, vector<16x128xf32> -> vector<16x128xf32>
    %120 = arith.addf %115, %119 : vector<16x128xf32>
    %121 = vector.extract_strided_slice %114 {offsets = [1, 0], sizes = [16, 128], strides = [1, 1]} : vector<18x128xf32> to vector<16x128xf32>
    %c3_78 = arith.constant 3 : index
    %c1_79 = arith.constant 1 : index
    %c0_80 = arith.constant 0 : index
    %c0_81 = arith.constant 0 : index
    %122 = vector.load %arg2[%c3_78, %c1_79, %c0_80, %c0_81] : memref<4x3x128x128xf32, #tpu.memory_space<vmem>>, vector<1x1x128x128xf32>
    %123 = vector.shape_cast %122 : vector<1x1x128x128xf32> to vector<128x128xf32>
    %cst_82 = arith.constant dense<0.000000e+00> : vector<16x128xf32>
    %124 = tpu.matmul %121, %123, %cst_82 {dimension_numbers = #tpu.dot_dimension_numbers<[1], [0], [0], [1], [0, 0, 1, 1], [], []>} : vector<16x128xf32>, vector<128x128xf32>, vector<16x128xf32> -> vector<16x128xf32>
    %125 = arith.addf %120, %124 : vector<16x128xf32>
    %126 = vector.extract_strided_slice %114 {offsets = [2, 0], sizes = [16, 128], strides = [1, 1]} : vector<18x128xf32> to vector<16x128xf32>
    %c3_83 = arith.constant 3 : index
    %c2_84 = arith.constant 2 : index
    %c0_85 = arith.constant 0 : index
    %c0_86 = arith.constant 0 : index
    %127 = vector.load %arg2[%c3_83, %c2_84, %c0_85, %c0_86] : memref<4x3x128x128xf32, #tpu.memory_space<vmem>>, vector<1x1x128x128xf32>
    %128 = vector.shape_cast %127 : vector<1x1x128x128xf32> to vector<128x128xf32>
    %cst_87 = arith.constant dense<0.000000e+00> : vector<16x128xf32>
    %129 = tpu.matmul %126, %128, %cst_87 {dimension_numbers = #tpu.dot_dimension_numbers<[1], [0], [0], [1], [0, 0, 1, 1], [], []>} : vector<16x128xf32>, vector<128x128xf32>, vector<16x128xf32> -> vector<16x128xf32>
    %130 = arith.addf %125, %129 : vector<16x128xf32>
    %cst_88 = arith.constant dense<0.000000e+00> : vector<128xf32>
    %131 = vector.multi_reduction <add>, %130, %cst_88 [0] : vector<16x128xf32> to vector<128xf32>
    %132 = vector.shape_cast %131 : vector<128xf32> to vector<1x128xf32>
    %cst_89 = arith.constant dense<0.000000e+00> : vector<1x128xf32>
    %133 = tpu.matmul %132, %0, %cst_89 {dimension_numbers = #tpu.dot_dimension_numbers<[1], [0], [0], [1], [0, 0, 1, 1], [], []>} : vector<1x128xf32>, vector<128x128xf32>, vector<1x128xf32> -> vector<1x128xf32>
    %cst_90 = arith.constant 3.906250e-03 : f32
    %134 = vector.broadcast %cst_90 : f32 to vector<1x128xf32>
    %135 = arith.mulf %133, %134 : vector<1x128xf32>
    %136 = vector.broadcast %135 : vector<1x128xf32> to vector<16x128xf32>
    %137 = arith.subf %130, %136 : vector<16x128xf32>
    %138 = arith.mulf %137, %137 : vector<16x128xf32>
    %cst_91 = arith.constant dense<0.000000e+00> : vector<128xf32>
    %139 = vector.multi_reduction <add>, %138, %cst_91 [0] : vector<16x128xf32> to vector<128xf32>
    %140 = vector.shape_cast %139 : vector<128xf32> to vector<1x128xf32>
    %cst_92 = arith.constant dense<0.000000e+00> : vector<1x128xf32>
    %141 = tpu.matmul %140, %0, %cst_92 {dimension_numbers = #tpu.dot_dimension_numbers<[1], [0], [0], [1], [0, 0, 1, 1], [], []>} : vector<1x128xf32>, vector<128x128xf32>, vector<1x128xf32> -> vector<1x128xf32>
    %cst_93 = arith.constant 3.906250e-03 : f32
    %142 = vector.broadcast %cst_93 : f32 to vector<1x128xf32>
    %143 = arith.mulf %141, %142 : vector<1x128xf32>
    %cst_94 = arith.constant 9.99999974E-6 : f32
    %144 = vector.broadcast %cst_94 : f32 to vector<1x128xf32>
    %145 = arith.addf %143, %144 : vector<1x128xf32>
    %146 = math.rsqrt %145 : vector<1x128xf32>
    %147 = vector.broadcast %146 : vector<1x128xf32> to vector<16x128xf32>
    %148 = arith.mulf %137, %147 : vector<16x128xf32>
    %149 = arith.addf %148, %76 : vector<16x128xf32>
    %c0_95 = arith.constant 0 : index
    %c0_96 = arith.constant 0 : index
    %c0_97 = arith.constant 0 : index
    %150 = vector.load %arg4[%c0_95, %c0_96, %c0_97] : memref<1x16x128xf32, #tpu.memory_space<vmem>>, vector<1x16x128xf32>
    %151 = vector.shape_cast %150 : vector<1x16x128xf32> to vector<16x128xf32>
    %152 = vector.shape_cast %149 : vector<16x128xf32> to vector<1x16x128xf32>
    tpu.vector_store %arg4[%c0_95, %c0_96, %c0_97], %152 {strides = array<i32>} : memref<1x16x128xf32, #tpu.memory_space<vmem>>, vector<1x16x128xf32>,
    return
  }
  func.func @transform_0(%arg0: i32) -> (i32, i32, i32) {
    %c0_i32 = arith.constant 0 : i32
    %c0_i32_0 = arith.constant 0 : i32
    %c0_i32_1 = arith.constant 0 : i32
    return %arg0, %c0_i32, %c0_i32_0 : i32, i32, i32
  }
  func.func @transform_1(%arg0: i32) -> (i32, i32, i32, i32) {
    %c0_i32 = arith.constant 0 : i32
    %c0_i32_0 = arith.constant 0 : i32
    %c0_i32_1 = arith.constant 0 : i32
    %c0_i32_2 = arith.constant 0 : i32
    %c0_i32_3 = arith.constant 0 : i32
    return %c0_i32, %c0_i32_0, %c0_i32_1, %c0_i32_2 : i32, i32, i32, i32
  }
  func.func @transform_2(%arg0: i32) -> (i32, i32) {
    %c0_i32 = arith.constant 0 : i32
    %c0_i32_0 = arith.constant 0 : i32
    %c0_i32_1 = arith.constant 0 : i32
    return %c0_i32, %c0_i32_0 : i32, i32
  }
  func.func @transform_3(%arg0: i32) -> (i32, i32, i32) {
    %c0_i32 = arith.constant 0 : i32
    %c0_i32_0 = arith.constant 0 : i32
    %c0_i32_1 = arith.constant 0 : i32
    return %arg0, %c0_i32, %c0_i32_0 : i32, i32, i32
  }
}

</mosaic_0001>

<llo_original>
// kernel: tpu_custom_call.1
$region0: #{tpu_custom_call.1}
  #allocation0 [shape = 'u32[]', space=smem, size = 0x4, offset = 0x4, fixed_abs, tag = 'smem constant byte address 0x4 - core index']
  #allocation1 [shape = 'u32[144,128]{1,0:T(1,128)}', space=vmem, size = 0x12000, scoped, tag = 'internal scratch']
  %s0 = inlined_call_operand.hbm [shape: f32[2,16,128], index: 0, kind: input, shape index: {}]
  %s1 = inlined_call_operand.hbm [shape: f32[4,3,128,128], index: 1, kind: input, shape index: {}]
  %s2 = inlined_call_operand.hbm [shape: f32[128,128], index: 2, kind: input, shape index: {}]
  %s3 = inlined_call_operand.hbm [shape: f32[2,16,128], index: 3, kind: output, shape index: {}]
  %s4 = sld [smem:[#allocation0]]
  $region57: #{tpu_custom_call.1} parent=0
    _
  %s6 = ssub.s32 1, %s4
  %s7 = scalar_select 0, %s6, %s4
  $region1: #{tpu_custom_call.1} parent=0
    #allocation2 [shape = 'u8[16384]{0}', space=vmem, size = 0x4000, scoped, tag = 'input window, operand 0']
    #allocation3 [shape = 's32[2]{0}', space=sflag, size = 0x8, scoped, tag = 'scoped memory for tpu_custom_call.1']
    #allocation4 [shape = 's32[2]{0}', space=sflag, size = 0x8, scoped, tag = 'scoped memory for tpu_custom_call.1']
    #allocation5 [shape = 'u8[786432]{0}', space=vmem, size = 0xc0000, scoped, tag = 'input window, operand 1, single buffered']
    #allocation6 [shape = 's32[1]{0}', space=sflag, size = 0x4, scoped, tag = 'scoped memory for tpu_custom_call.1']
    #allocation7 [shape = 'u8[65536]{0}', space=vmem, size = 0x10000, scoped, tag = 'input window, operand 2, single buffered']
    #allocation8 [shape = 'u8[16384]{0}', space=vmem, size = 0x4000, scoped, tag = 'output window, operand 0']
    %8 = vsyncpa [#allocation3], 0
    %s9 = scalar_lea.sflag [#allocation3], 1
    %10 = vsyncpa %s9, 0
    %11 = vsyncpa [#allocation6], 0
    %12 = vsyncpa [#allocation4], 0
    %s13 = scalar_lea.sflag [#allocation4], 1
    %14 = vsyncpa %s13, 0
    loop: start=0, step=1, limit=4
    $region2: #{tpu_custom_call.1} parent=1 // loop_pre_header
      _
    $region3: #{tpu_custom_call.1} parent=1 // loop_header
      %s16 = sphi 0, %s20
      %p17 = scmp.ge.s32.totalorder %s16, 4
      %s26 = sphi 0, %s28
      %s29 = sphi 0, %s26
      %s30 = sphi 0, %s29
      %s46 = sphi 0, %s30
      %s50 = sphi 0, %s50
      %s52 = sphi 0, %s50
      %s53 = sphi 0, %s52
      %s67 = sphi 0, %s53
      %s71 = sphi 0, %s71
      %s73 = sphi 0, %s71
      %s74 = sphi 0, %s73
      %s88 = sphi 0, %s74
      %s94 = sphi 0, %s96
      %s97 = sphi 0, %s94
      %s98 = sphi 0, %s97
      %s114 = sphi 0, %s98
    $region4: #{tpu_custom_call.1} parent=1 // loop_header_branch
      %19 = sbr.rel (%p17) target = $region8
    $region5: #{tpu_custom_call.1} parent=1 // loop_body
      %s21 = ssub.s32 %s16, 1
      %s22 = ssub.s32 %s16, 2
      %s23 = sadd.s32 %s16, 1
      %s24 = ssub.s32 %s16, %s23
      %p25 = scmp.eq.s32.totalorder %s24, 0
      %s27 = sadd.s32 %s26, 1
      %s28 = scalar_select %p25, %s26, %s27
      %p31 = pneg %p25
      %p32 = scmp.eq.s32.totalorder %s16, 1
      %p33 = por %p31, %p32
      %p34 = scmp.ne.s32.totalorder %s26, %s29
      %p35 = scmp.eq.s32.totalorder %s16, 0
      %p36 = por %p34, %p35
      %p37 = scmp.ne.s32.totalorder %s26, %s29
      %p38 = scmp.eq.s32.totalorder %s21, 1
      %p39 = por %p37, %p38
      %p40 = scmp.ne.s32.totalorder %s29, %s30
      %p41 = scmp.eq.s32.totalorder %s21, 0
      %p42 = por %p40, %p41
      %p43 = scmp.ne.s32.totalorder %s29, %s30
      %p44 = scmp.eq.s32.totalorder %s22, 1
      %p45 = por %p43, %p44
      %p47 = scmp.ne.s32.totalorder %s30, %s46
      %p48 = scmp.eq.s32.totalorder %s22, 0
      %p49 = por %p47, %p48
      %s51 = sadd.s32 %s50, 1
      %p54 = scmp.eq.s32.totalorder %s16, 1
      %p55 = scmp.ne.s32.totalorder %s50, %s52
      %p56 = scmp.eq.s32.totalorder %s16, 0
      %p57 = por %p55, %p56
      %p58 = scmp.ne.s32.totalorder %s50, %s52
      %p59 = scmp.eq.s32.totalorder %s21, 1
      %p60 = por %p58, %p59
      %p61 = scmp.ne.s32.totalorder %s52, %s53
      %p62 = scmp.eq.s32.totalorder %s21, 0
      %p63 = por %p61, %p62
      %p64 = scmp.ne.s32.totalorder %s52, %s53
      %p65 = scmp.eq.s32.totalorder %s22, 1
      %p66 = por %p64, %p65
      %p68 = scmp.ne.s32.totalorder %s53, %s67
      %p69 = scmp.eq.s32.totalorder %s22, 0
      %p70 = por %p68, %p69
      %s72 = sadd.s32 %s71, 1
      %p75 = scmp.eq.s32.totalorder %s16, 1
      %p76 = scmp.ne.s32.totalorder %s71, %s73
      %p77 = scmp.eq.s32.totalorder %s16, 0
      %p78 = por %p76, %p77
      %p79 = scmp.ne.s32.totalorder %s71, %s73
      %p80 = scmp.eq.s32.totalorder %s21, 1
      %p81 = por %p79, %p80
      %p82 = scmp.ne.s32.totalorder %s73, %s74
      %p83 = scmp.eq.s32.totalorder %s21, 0
      %p84 = por %p82, %p83
      %p85 = scmp.ne.s32.totalorder %s73, %s74
      %p86 = scmp.eq.s32.totalorder %s22, 1
      %p87 = por %p85, %p86
      %p89 = scmp.ne.s32.totalorder %s74, %s88
      %p90 = scmp.eq.s32.totalorder %s22, 0
      %p91 = por %p89, %p90
      %s92 = ssub.s32 %s16, %s23
      %p93 = scmp.eq.s32.totalorder %s92, 0
      %s95 = sadd.s32 %s94, 1
      %s96 = scalar_select %p93, %s94, %s95
      %p99 = pneg %p93
      %p100 = scmp.eq.s32.totalorder %s16, 1
      %p101 = por %p99, %p100
      %p102 = scmp.ne.s32.totalorder %s94, %s97
      %p103 = scmp.eq.s32.totalorder %s16, 0
      %p104 = por %p102, %p103
      %p105 = scmp.ne.s32.totalorder %s94, %s97
      %p106 = scmp.eq.s32.totalorder %s21, 1
      %p107 = por %p105, %p106
      %p108 = scmp.ne.s32.totalorder %s97, %s98
      %p109 = scmp.eq.s32.totalorder %s21, 0
      %p110 = por %p108, %p109
      %p111 = scmp.ne.s32.totalorder %s97, %s98
      %p112 = scmp.eq.s32.totalorder %s22, 1
      %p113 = por %p111, %p112
      %p115 = scmp.ne.s32.totalorder %s98, %s114
      %p116 = scmp.eq.s32.totalorder %s22, 0
      %p117 = por %p115, %p116
      %p118 = scmp.le.s32.totalorder 1, %s16
      %p119 = scmp.lt.s32.totalorder %s16, 3
      %p120 = pnand %p118, %p119
      %p121 = pneg %p120
      // Predicated region
      $region9: #{tpu_custom_call.1} parent=5 // pred_check
        _
      $region10: #{tpu_custom_call.1} parent=5 // pred_check_branch
        %123 = sbr.rel (%p120) target = $region12
      $region11: #{tpu_custom_call.1} parent=5 // pred_region
        %s124 = ssub.s32 %s16, 1
        // Predicated region
        $region13: #{tpu_custom_call.1} parent=11 // pred_check
          %p125 = pneg %p63
        $region14: #{tpu_custom_call.1} parent=11 // pred_check_branch
          %127 = sbr.rel (%p125) target = $region16
        $region15: #{tpu_custom_call.1} parent=11 // pred_region
          %s129 = ssub.s32 24576, 24576
          %130 = vsyncadd [#allocation6], %s129
          %s131 = sshll.u32 [#allocation5], 4
          %s132 = int_to_ptr.vmem [resolvable:$true] %s131
          %137 = dma.hbm_to_vmem [thread:$0]  %s1, 24576, %s132, [#allocation6], 128, 128, 8
        $region16: #{tpu_custom_call.1} parent=11 // pred_fallthru
          _
        // Predicated region
        $region17: #{tpu_custom_call.1} parent=11 // pred_check
          %p138 = pneg %p84
        $region18: #{tpu_custom_call.1} parent=11 // pred_check_branch
          %140 = sbr.rel (%p138) target = $region20
        $region19: #{tpu_custom_call.1} parent=11 // pred_region
          %s142 = ssub.s32 2048, 2048
          %143 = vsyncadd [#allocation6], %s142
          %s144 = sshll.u32 [#allocation7], 4
          %s145 = int_to_ptr.vmem [resolvable:$true] %s144
          %150 = dma.hbm_to_vmem [thread:$0]  %s2, 2048, %s145, [#allocation6], 128, 128, 8
        $region20: #{tpu_custom_call.1} parent=11 // pred_fallthru
          _
      $region12: #{tpu_custom_call.1} parent=5 // pred_fallthru
        _
      %p151 = scmp.lt.s32.totalorder %s16, 2
      // Predicated region
      $region21: #{tpu_custom_call.1} parent=5 // pred_check
        %p152 = pneg %p151
      $region22: #{tpu_custom_call.1} parent=5 // pred_check_branch
        %154 = sbr.rel (%p152) target = $region24
      $region23: #{tpu_custom_call.1} parent=5 // pred_region
        // Predicated region
        $region25: #{tpu_custom_call.1} parent=23 // pred_check
          %p155 = pneg %p36
        $region26: #{tpu_custom_call.1} parent=23 // pred_check_branch
          %157 = sbr.rel (%p155) target = $region28
        $region27: #{tpu_custom_call.1} parent=23 // pred_region
          %s158 = sand.u32 %s26, 1
          %s159 = scalar_lea.sflag [#allocation3], %s158
          %s160 = sand.u32 %s26, 1
          %s161 = smul.addr %s160, 16
          %s162 = scalar_lea.vmem [#allocation2], %s161
          %s164 = ssub.s32 256, 256
          %165 = vsyncadd %s159, %s164
          %s166 = smul.addr %s16, 2
          %s167 = smul.addr %s166, 128
          %s168 = scalar_lea.hbm %s0, %s167
          %s169 = sshll.u32 %s162, 4
          %s170 = int_to_ptr.vmem [resolvable:$true] %s169
          %175 = dma.hbm_to_vmem [thread:$0]  %s168, 256, %s170, %s159, 128, 128, 8
        $region28: #{tpu_custom_call.1} parent=23 // pred_fallthru
          _
      $region24: #{tpu_custom_call.1} parent=5 // pred_fallthru
        _
      %p176 = scmp.le.s32.totalorder 1, %s16
      %p177 = scmp.lt.s32.totalorder %s16, 3
      %p178 = pnand %p176, %p177
      %p179 = pneg %p178
      // Predicated region
      $region29: #{tpu_custom_call.1} parent=5 // pred_check
        _
      $region30: #{tpu_custom_call.1} parent=5 // pred_check_branch
        %181 = sbr.rel (%p178) target = $region32
      $region31: #{tpu_custom_call.1} parent=5 // pred_region
        %s182 = ssub.s32 %s16, 1
        %s183 = sand.u32 %s29, 1
        %s184 = scalar_lea.sflag [#allocation3], %s183
        %s185 = sand.u32 %s29, 1
        %s186 = smul.addr %s185, 16
        %s187 = scalar_lea.vmem [#allocation2], %s186
        // Predicated region
        $region33: #{tpu_custom_call.1} parent=31 // pred_check
          %p188 = pneg %p42
        $region34: #{tpu_custom_call.1} parent=31 // pred_check_branch
          %190 = sbr.rel (%p188) target = $region36
        $region35: #{tpu_custom_call.1} parent=31 // pred_region
          %191 = dma.done %s184, 256
        $region36: #{tpu_custom_call.1} parent=31 // pred_fallthru
          _
        // Predicated region
        $region37: #{tpu_custom_call.1} parent=31 // pred_check
          %p192 = pneg %p63
        $region38: #{tpu_custom_call.1} parent=31 // pred_check_branch
          %194 = sbr.rel (%p192) target = $region40
        $region39: #{tpu_custom_call.1} parent=31 // pred_region
          %195 = dma.done [#allocation6], 24576
        $region40: #{tpu_custom_call.1} parent=31 // pred_fallthru
          _
        // Predicated region
        $region41: #{tpu_custom_call.1} parent=31 // pred_check
          %p196 = pneg %p84
        $region42: #{tpu_custom_call.1} parent=31 // pred_check_branch
          %198 = sbr.rel (%p196) target = $region44
        $region43: #{tpu_custom_call.1} parent=31 // pred_region
          %199 = dma.done [#allocation6], 2048
        $region44: #{tpu_custom_call.1} parent=31 // pred_fallthru
          _
        %s200 = sand.u32 %s29, 1
        %s201 = scalar_lea.sflag [#allocation3], %s200
        %s202 = sand.u32 %s29, 1
        %s203 = smul.addr %s202, 16
        %s204 = scalar_lea.vmem [#allocation2], %s203
        %p205 = pneg %p42
        %p206 = pneg %p39
        %p207 = pneg %p63
        %p208 = pneg %p60
        %p209 = pneg %p84
        %p210 = pneg %p81
        %p211 = pneg %p110
        %p212 = pneg %p107
        %s213 = sand.u32 %s97, 1
        %s214 = scalar_lea.sflag [#allocation4], %s213
        %s215 = sand.u32 %s97, 1
        %s216 = smul.addr %s215, 16
        %s217 = scalar_lea.vmem [#allocation8], %s216
        %v218 = vld [vmem:[#allocation7] sm:$0xff]
        %v219 = vld [vmem:[#allocation7 + $0x8] sm:$0xff]
        %v220 = vld [vmem:[#allocation7 + $0x10] sm:$0xff]
        %v221 = vld [vmem:[#allocation7 + $0x18] sm:$0xff]
        %v222 = vld [vmem:[#allocation7 + $0x20] sm:$0xff]
        %v223 = vld [vmem:[#allocation7 + $0x28] sm:$0xff]
        %v224 = vld [vmem:[#allocation7 + $0x30] sm:$0xff]
        %v225 = vld [vmem:[#allocation7 + $0x38] sm:$0xff]
        %v226 = vld [vmem:[#allocation7 + $0x40] sm:$0xff]
        %v227 = vld [vmem:[#allocation7 + $0x48] sm:$0xff]
        %v228 = vld [vmem:[#allocation7 + $0x50] sm:$0xff]
        %v229 = vld [vmem:[#allocation7 + $0x58] sm:$0xff]
        %v230 = vld [vmem:[#allocation7 + $0x60] sm:$0xff]
        %v231 = vld [vmem:[#allocation7 + $0x68] sm:$0xff]
        %v232 = vld [vmem:[#allocation7 + $0x70] sm:$0xff]
        %v233 = vld [vmem:[#allocation7 + $0x78] sm:$0xff]
        %v234 = vld [vmem:[%s187] sm:$0xff]
        %v235 = vld [vmem:[%s187 + $0x8] sm:$0xff]
        %vm238 = vcmask 1040384
        %v239 = vrot.slane %v234, 7
        %v240 = vrot.slane %v235, 7
        %v241 = vsel %vm238, %v239, %v240
        %v245 = vsel %vm238, 0.0, %v239
        %v246 = vsel %vm238, %v240, 0.0
        %v247 = vld [vmem:[#allocation5] sm:$0xff]
        %v248 = vld [vmem:[#allocation5 + $0x8] sm:$0xff]
        %v249 = vld [vmem:[#allocation5 + $0x10] sm:$0xff]
        %v250 = vld [vmem:[#allocation5 + $0x18] sm:$0xff]
        %v251 = vld [vmem:[#allocation5 + $0x20] sm:$0xff]
        %v252 = vld [vmem:[#allocation5 + $0x28] sm:$0xff]
        %v253 = vld [vmem:[#allocation5 + $0x30] sm:$0xff]
        %v254 = vld [vmem:[#allocation5 + $0x38] sm:$0xff]
        %v255 = vld [vmem:[#allocation5 + $0x40] sm:$0xff]
        %v256 = vld [vmem:[#allocation5 + $0x48] sm:$0xff]
        %v257 = vld [vmem:[#allocation5 + $0x50] sm:$0xff]
        %v258 = vld [vmem:[#allocation5 + $0x58] sm:$0xff]
        %v259 = vld [vmem:[#allocation5 + $0x60] sm:$0xff]
        %v260 = vld [vmem:[#allocation5 + $0x68] sm:$0xff]
        %v261 = vld [vmem:[#allocation5 + $0x70] sm:$0xff]
        %v262 = vld [vmem:[#allocation5 + $0x78] sm:$0xff]
        %s263 = scalar_lea.vmem [#allocation5], 128
        %v264 = vld [vmem:[%s263] sm:$0xff]
        %v265 = vld [vmem:[%s263 + $0x8] sm:$0xff]
        %v266 = vld [vmem:[%s263 + $0x10] sm:$0xff]
        %v267 = vld [vmem:[%s263 + $0x18] sm:$0xff]
        %v268 = vld [vmem:[%s263 + $0x20] sm:$0xff]
        %v269 = vld [vmem:[%s263 + $0x28] sm:$0xff]
        %v270 = vld [vmem:[%s263 + $0x30] sm:$0xff]
        %v271 = vld [vmem:[%s263 + $0x38] sm:$0xff]
        %v272 = vld [vmem:[%s263 + $0x40] sm:$0xff]
        %v273 = vld [vmem:[%s263 + $0x48] sm:$0xff]
        %v274 = vld [vmem:[%s263 + $0x50] sm:$0xff]
        %v275 = vld [vmem:[%s263 + $0x58] sm:$0xff]
        %v276 = vld [vmem:[%s263 + $0x60] sm:$0xff]
        %v277 = vld [vmem:[%s263 + $0x68] sm:$0xff]
        %v278 = vld [vmem:[%s263 + $0x70] sm:$0xff]
        %v279 = vld [vmem:[%s263 + $0x78] sm:$0xff]
        %vm282 = vcmask 1046528
        %v283 = vrot.slane %v245, 1
        %v284 = vrot.slane %v241, 1
        %v285 = vsel %vm282, %v283, %v284
        %v286 = vrot.slane %v246, 1
        %v287 = vsel %vm282, %v284, %v286
        %290 = vmatprep.subr.mxu0 0.0
        %291 = vmatpush1.msra.mxu0 %v264
        %292 = vmatprep.subr.mxu0 0.0
        %293 = vmatpush1.msra.mxu0 %v265
        %294 = vmatprep.subr.mxu0 0.0
        %295 = vmatpush1.msra.mxu0 %v266
        %296 = vmatprep.subr.mxu0 0.0
        %297 = vmatpush1.msra.mxu0 %v267
        %298 = vmatprep.subr.mxu0 0.0
        %299 = vmatpush1.msra.mxu0 %v268
        %300 = vmatprep.subr.mxu0 0.0
        %301 = vmatpush1.msra.mxu0 %v269
        %302 = vmatprep.subr.mxu0 0.0
        %303 = vmatpush1.msra.mxu0 %v270
        %304 = vmatprep.subr.mxu0 0.0
        %305 = vmatpush1.msra.mxu0 %v271
        %306 = vmatprep.subr.mxu0 0.0
        %307 = vmatpush1.msra.mxu0 %v272
        %308 = vmatprep.subr.mxu0 0.0
        %309 = vmatpush1.msra.mxu0 %v273
        %310 = vmatprep.subr.mxu0 0.0
        %311 = vmatpush1.msra.mxu0 %v274
        %312 = vmatprep.subr.mxu0 0.0
        %313 = vmatpush1.msra.mxu0 %v275
        %314 = vmatprep.subr.mxu0 0.0
        %315 = vmatpush1.msra.mxu0 %v276
        %316 = vmatprep.subr.mxu0 0.0
        %317 = vmatpush1.msra.mxu0 %v277
        %318 = vmatprep.subr.mxu0 0.0
        %319 = vmatpush1.msra.mxu0 %v278
        %320 = vmatprep.subr.mxu0 0.0
        %321 = vmatpush1.msra.mxu0 %v279
        %322 = vmatprep.subr.mxu0 0.0
        %323 = vmatpush1.msra.mxu0 0.0
        %324 = vmatprep.subr.mxu0 0.0
        %325 = vmatpush1.msra.mxu0 0.0
        %326 = vmatprep.subr.mxu0 0.0
        %327 = vmatpush1.msra.mxu0 0.0
        %328 = vmatprep.subr.mxu0 0.0
        %329 = vmatpush1.msra.mxu0 0.0
        %330 = vmatprep.subr.mxu0 0.0
        %331 = vmatpush1.msra.mxu0 0.0
        %332 = vmatprep.subr.mxu0 0.0
        %333 = vmatpush1.msra.mxu0 0.0
        %334 = vmatprep.subr.mxu0 0.0
        %335 = vmatpush1.msra.mxu0 0.0
        %336 = vmatprep.subr.mxu0 0.0
        %337 = vmatpush1.msra.mxu0 0.0
        %338 = vmatprep.subr.mxu0 0.0
        %339 = vmatpush1.msra.mxu0 0.0
        %340 = vmatprep.subr.mxu0 0.0
        %341 = vmatpush1.msra.mxu0 0.0
        %342 = vmatprep.subr.mxu0 0.0
        %343 = vmatpush1.msra.mxu0 0.0
        %344 = vmatprep.subr.mxu0 0.0
        %345 = vmatpush1.msra.mxu0 0.0
        %346 = vmatprep.subr.mxu0 0.0
        %347 = vmatpush1.msra.mxu0 0.0
        %348 = vmatprep.subr.mxu0 0.0
        %349 = vmatpush1.msra.mxu0 0.0
        %350 = vmatprep.subr.mxu0 0.0
        %351 = vmatpush1.msra.mxu0 0.0
        %352 = vmatprep.subr.mxu0 0.0
        %353 = vmatpush1.msra.mxu0 0.0
        %354 = vmatprep.mubr.f32.mxu0 0.0
        %355 = vmatmul.mubr.f32.gmra.mrb[0].mxu0 %v285
        %v356 = vpop.f32.mrb[0].mxu0
        %v357 = vadd.f32 0.0, %v356
        %v358 = vpop.f32.mrb[0].mxu0
        %359 = vmatprep.mubr.f32.mxu0 0.0
        %360 = vmatmul.mubr.f32.gmra.mrb[0].mxu0 %v287
        %v361 = vpop.f32.mrb[0].mxu0
        %v362 = vadd.f32 0.0, %v361
        %v363 = vpop.f32.mrb[0].mxu0
        %364 = vdwg.mxu0
        %365 = vmatprep.subr.mxu0 0.0
        %366 = vmatpush1.msra.mxu0 %v247
        %367 = vmatprep.subr.mxu0 0.0
        %368 = vmatpush1.msra.mxu0 %v248
        %369 = vmatprep.subr.mxu0 0.0
        %370 = vmatpush1.msra.mxu0 %v249
        %371 = vmatprep.subr.mxu0 0.0
        %372 = vmatpush1.msra.mxu0 %v250
        %373 = vmatprep.subr.mxu0 0.0
        %374 = vmatpush1.msra.mxu0 %v251
        %375 = vmatprep.subr.mxu0 0.0
        %376 = vmatpush1.msra.mxu0 %v252
        %377 = vmatprep.subr.mxu0 0.0
        %378 = vmatpush1.msra.mxu0 %v253
        %379 = vmatprep.subr.mxu0 0.0
        %380 = vmatpush1.msra.mxu0 %v254
        %381 = vmatprep.subr.mxu0 0.0
        %382 = vmatpush1.msra.mxu0 %v255
        %383 = vmatprep.subr.mxu0 0.0
        %384 = vmatpush1.msra.mxu0 %v256
        %385 = vmatprep.subr.mxu0 0.0
        %386 = vmatpush1.msra.mxu0 %v257
        %387 = vmatprep.subr.mxu0 0.0
        %388 = vmatpush1.msra.mxu0 %v258
        %389 = vmatprep.subr.mxu0 0.0
        %390 = vmatpush1.msra.mxu0 %v259
        %391 = vmatprep.subr.mxu0 0.0
        %392 = vmatpush1.msra.mxu0 %v260
        %393 = vmatprep.subr.mxu0 0.0
        %394 = vmatpush1.msra.mxu0 %v261
        %395 = vmatprep.subr.mxu0 0.0
        %396 = vmatpush1.msra.mxu0 %v262
        %397 = vmatprep.subr.mxu0 0.0
        %398 = vmatpush1.msra.mxu0 0.0
        %399 = vmatprep.subr.mxu0 0.0
        %400 = vmatpush1.msra.mxu0 0.0
        %401 = vmatprep.subr.mxu0 0.0
        %402 = vmatpush1.msra.mxu0 0.0
        %403 = vmatprep.subr.mxu0 0.0
        %404 = vmatpush1.msra.mxu0 0.0
        %405 = vmatprep.subr.mxu0 0.0
        %406 = vmatpush1.msra.mxu0 0.0
        %407 = vmatprep.subr.mxu0 0.0
        %408 = vmatpush1.msra.mxu0 0.0
        %409 = vmatprep.subr.mxu0 0.0
        %410 = vmatpush1.msra.mxu0 0.0
        %411 = vmatprep.subr.mxu0 0.0
        %412 = vmatpush1.msra.mxu0 0.0
        %413 = vmatprep.subr.mxu0 0.0
        %414 = vmatpush1.msra.mxu0 0.0
        %415 = vmatprep.subr.mxu0 0.0
        %416 = vmatpush1.msra.mxu0 0.0
        %417 = vmatprep.subr.mxu0 0.0
        %418 = vmatpush1.msra.mxu0 0.0
        %419 = vmatprep.subr.mxu0 0.0
        %420 = vmatpush1.msra.mxu0 0.0
        %421 = vmatprep.subr.mxu0 0.0
        %422 = vmatpush1.msra.mxu0 0.0
        %423 = vmatprep.subr.mxu0 0.0
        %424 = vmatpush1.msra.mxu0 0.0
        %425 = vmatprep.subr.mxu0 0.0
        %426 = vmatpush1.msra.mxu0 0.0
        %427 = vmatprep.subr.mxu0 0.0
        %428 = vmatpush1.msra.mxu0 0.0
        %429 = vmatprep.mubr.f32.mxu0 0.0
        %430 = vmatmul.mubr.f32.gmra.mrb[0].mxu0 %v245
        %v431 = vpop.f32.mrb[0].mxu0
        %v432 = vadd.f32 %v357, %v431
        %v433 = vpop.f32.mrb[0].mxu0
        %434 = vmatprep.mubr.f32.mxu0 0.0
        %435 = vmatmul.mubr.f32.gmra.mrb[0].mxu0 %v241
        %v436 = vpop.f32.mrb[0].mxu0
        %v437 = vadd.f32 %v362, %v436
        %v438 = vpop.f32.mrb[0].mxu0
        %439 = vdwg.mxu0
        %s440 = scalar_lea.vmem [#allocation5], 256
        %v441 = vld [vmem:[%s440] sm:$0xff]
        %v442 = vld [vmem:[%s440 + $0x8] sm:$0xff]
        %v443 = vld [vmem:[%s440 + $0x10] sm:$0xff]
        %v444 = vld [vmem:[%s440 + $0x18] sm:$0xff]
        %v445 = vld [vmem:[%s440 + $0x20] sm:$0xff]
        %v446 = vld [vmem:[%s440 + $0x28] sm:$0xff]
        %v447 = vld [vmem:[%s440 + $0x30] sm:$0xff]
        %v448 = vld [vmem:[%s440 + $0x38] sm:$0xff]
        %v449 = vld [vmem:[%s440 + $0x40] sm:$0xff]
        %v450 = vld [vmem:[%s440 + $0x48] sm:$0xff]
        %v451 = vld [vmem:[%s440 + $0x50] sm:$0xff]
        %v452 = vld [vmem:[%s440 + $0x58] sm:$0xff]
        %v453 = vld [vmem:[%s440 + $0x60] sm:$0xff]
        %v454 = vld [vmem:[%s440 + $0x68] sm:$0xff]
        %v455 = vld [vmem:[%s440 + $0x70] sm:$0xff]
        %v456 = vld [vmem:[%s440 + $0x78] sm:$0xff]
        %vm457 = vcmask 1045504
        %v458 = vrot.slane %v245, 2
        %v459 = vrot.slane %v241, 2
        %v460 = vsel %vm457, %v458, %v459
        %v461 = vrot.slane %v246, 2
        %v462 = vsel %vm457, %v459, %v461
        %465 = vmatprep.subr.mxu0 0.0
        %466 = vmatpush1.msra.mxu0 %v441
        %467 = vmatprep.subr.mxu0 0.0
        %468 = vmatpush1.msra.mxu0 %v442
        %469 = vmatprep.subr.mxu0 0.0
        %470 = vmatpush1.msra.mxu0 %v443
        %471 = vmatprep.subr.mxu0 0.0
        %472 = vmatpush1.msra.mxu0 %v444
        %473 = vmatprep.subr.mxu0 0.0
        %474 = vmatpush1.msra.mxu0 %v445
        %475 = vmatprep.subr.mxu0 0.0
        %476 = vmatpush1.msra.mxu0 %v446
        %477 = vmatprep.subr.mxu0 0.0
        %478 = vmatpush1.msra.mxu0 %v447
        %479 = vmatprep.subr.mxu0 0.0
        %480 = vmatpush1.msra.mxu0 %v448
        %481 = vmatprep.subr.mxu0 0.0
        %482 = vmatpush1.msra.mxu0 %v449
        %483 = vmatprep.subr.mxu0 0.0
        %484 = vmatpush1.msra.mxu0 %v450
        %485 = vmatprep.subr.mxu0 0.0
        %486 = vmatpush1.msra.mxu0 %v451
        %487 = vmatprep.subr.mxu0 0.0
        %488 = vmatpush1.msra.mxu0 %v452
        %489 = vmatprep.subr.mxu0 0.0
        %490 = vmatpush1.msra.mxu0 %v453
        %491 = vmatprep.subr.mxu0 0.0
        %492 = vmatpush1.msra.mxu0 %v454
        %493 = vmatprep.subr.mxu0 0.0
        %494 = vmatpush1.msra.mxu0 %v455
        %495 = vmatprep.subr.mxu0 0.0
        %496 = vmatpush1.msra.mxu0 %v456
        %497 = vmatprep.subr.mxu0 0.0
        %498 = vmatpush1.msra.mxu0 0.0
        %499 = vmatprep.subr.mxu0 0.0
        %500 = vmatpush1.msra.mxu0 0.0
        %501 = vmatprep.subr.mxu0 0.0
        %502 = vmatpush1.msra.mxu0 0.0
        %503 = vmatprep.subr.mxu0 0.0
        %504 = vmatpush1.msra.mxu0 0.0
        %505 = vmatprep.subr.mxu0 0.0
        %506 = vmatpush1.msra.mxu0 0.0
        %507 = vmatprep.subr.mxu0 0.0
        %508 = vmatpush1.msra.mxu0 0.0
        %509 = vmatprep.subr.mxu0 0.0
        %510 = vmatpush1.msra.mxu0 0.0
        %511 = vmatprep.subr.mxu0 0.0
        %512 = vmatpush1.msra.mxu0 0.0
        %513 = vmatprep.subr.mxu0 0.0
        %514 = vmatpush1.msra.mxu0 0.0
        %515 = vmatprep.subr.mxu0 0.0
        %516 = vmatpush1.msra.mxu0 0.0
        %517 = vmatprep.subr.mxu0 0.0
        %518 = vmatpush1.msra.mxu0 0.0
        %519 = vmatprep.subr.mxu0 0.0
        %520 = vmatpush1.msra.mxu0 0.0
        %521 = vmatprep.subr.mxu0 0.0
        %522 = vmatpush1.msra.mxu0 0.0
        %523 = vmatprep.subr.mxu0 0.0
        %524 = vmatpush1.msra.mxu0 0.0
        %525 = vmatprep.subr.mxu0 0.0
        %526 = vmatpush1.msra.mxu0 0.0
        %527 = vmatprep.subr.mxu0 0.0
        %528 = vmatpush1.msra.mxu0 0.0
        %529 = vmatprep.mubr.f32.mxu0 0.0
        %530 = vmatmul.mubr.f32.gmra.mrb[0].mxu0 %v460
        %v531 = vpop.f32.mrb[0].mxu0
        %v532 = vadd.f32 0.0, %v531
        %v533 = vpop.f32.mrb[0].mxu0
        %534 = vmatprep.mubr.f32.mxu0 0.0
        %535 = vmatmul.mubr.f32.gmra.mrb[0].mxu0 %v462
        %v536 = vpop.f32.mrb[0].mxu0
        %v537 = vadd.f32 0.0, %v536
        %v538 = vpop.f32.mrb[0].mxu0
        %539 = vdwg.mxu0
        %v540 = vadd.f32 %v432, %v532
        %v541 = vadd.f32 %v437, %v537
        %v542 = vadd.f32 %v540, %v541
        %v543 = vrot.slane %v542, 4
        %v544 = vadd.f32 %v542, %v543
        %v545 = vrot.slane %v544, 2
        %v546 = vadd.f32 %v544, %v545
        %v547 = vrot.slane %v546, 1
        %v548 = vadd.f32 %v546, %v547
        %549 = vmatprep.subr.mxu0 0.0
        %550 = vmatpush1.msra.mxu0 %v218
        %551 = vmatprep.subr.mxu0 0.0
        %552 = vmatpush1.msra.mxu0 %v219
        %553 = vmatprep.subr.mxu0 0.0
        %554 = vmatpush1.msra.mxu0 %v220
        %555 = vmatprep.subr.mxu0 0.0
        %556 = vmatpush1.msra.mxu0 %v221
        %557 = vmatprep.subr.mxu0 0.0
        %558 = vmatpush1.msra.mxu0 %v222
        %559 = vmatprep.subr.mxu0 0.0
        %560 = vmatpush1.msra.mxu0 %v223
        %561 = vmatprep.subr.mxu0 0.0
        %562 = vmatpush1.msra.mxu0 %v224
        %563 = vmatprep.subr.mxu0 0.0
        %564 = vmatpush1.msra.mxu0 %v225
        %565 = vmatprep.subr.mxu0 0.0
        %566 = vmatpush1.msra.mxu0 %v226
        %567 = vmatprep.subr.mxu0 0.0
        %568 = vmatpush1.msra.mxu0 %v227
        %569 = vmatprep.subr.mxu0 0.0
        %570 = vmatpush1.msra.mxu0 %v228
        %571 = vmatprep.subr.mxu0 0.0
        %572 = vmatpush1.msra.mxu0 %v229
        %573 = vmatprep.subr.mxu0 0.0
        %574 = vmatpush1.msra.mxu0 %v230
        %575 = vmatprep.subr.mxu0 0.0
        %576 = vmatpush1.msra.mxu0 %v231
        %577 = vmatprep.subr.mxu0 0.0
        %578 = vmatpush1.msra.mxu0 %v232
        %579 = vmatprep.subr.mxu0 0.0
        %580 = vmatpush1.msra.mxu0 %v233
        %581 = vmatprep.subr.mxu0 0.0
        %582 = vmatpush1.msra.mxu0 0.0
        %583 = vmatprep.subr.mxu0 0.0
        %584 = vmatpush1.msra.mxu0 0.0
        %585 = vmatprep.subr.mxu0 0.0
        %586 = vmatpush1.msra.mxu0 0.0
        %587 = vmatprep.subr.mxu0 0.0
        %588 = vmatpush1.msra.mxu0 0.0
        %589 = vmatprep.subr.mxu0 0.0
        %590 = vmatpush1.msra.mxu0 0.0
        %591 = vmatprep.subr.mxu0 0.0
        %592 = vmatpush1.msra.mxu0 0.0
        %593 = vmatprep.subr.mxu0 0.0
        %594 = vmatpush1.msra.mxu0 0.0
        %595 = vmatprep.subr.mxu0 0.0
        %596 = vmatpush1.msra.mxu0 0.0
        %597 = vmatprep.subr.mxu0 0.0
        %598 = vmatpush1.msra.mxu0 0.0
        %599 = vmatprep.subr.mxu0 0.0
        %600 = vmatpush1.msra.mxu0 0.0
        %601 = vmatprep.subr.mxu0 0.0
        %602 = vmatpush1.msra.mxu0 0.0
        %603 = vmatprep.subr.mxu0 0.0
        %604 = vmatpush1.msra.mxu0 0.0
        %605 = vmatprep.subr.mxu0 0.0
        %606 = vmatpush1.msra.mxu0 0.0
        %607 = vmatprep.subr.mxu0 0.0
        %608 = vmatpush1.msra.mxu0 0.0
        %609 = vmatprep.subr.mxu0 0.0
        %610 = vmatpush1.msra.mxu0 0.0
        %611 = vmatprep.subr.mxu0 0.0
        %612 = vmatpush1.msra.mxu0 0.0
        %613 = vmatprep.mubr.f32.mxu0 0.0
        %614 = vmatmul.mubr.f32.gmra.mrb[0].mxu0 %v548
        %v615 = vpop.f32.mrb[0].mxu0
        %v616 = vadd.f32 0.0, %v615
        %v617 = vpop.f32.mrb[0].mxu0
        %618 = vdwg.mxu0
        %v619 = vmul.f32 %v616, 0.00390625
        %v620 = vlaneseq
        %v621 = vshrl.u32 %v620, 7
        %v622 = vsub.s32 0, %v621
        %v623 = vrot.slane %v619, %v622
        %v624 = vsub.f32 %v540, %v623
        %v625 = vsub.f32 %v541, %v623
        %v626 = vmul.f32 %v624, %v624
        %v627 = vmul.f32 %v625, %v625
        %v628 = vadd.f32 %v626, %v627
        %v629 = vrot.slane %v628, 4
        %v630 = vadd.f32 %v628, %v629
        %v631 = vrot.slane %v630, 2
        %v632 = vadd.f32 %v630, %v631
        %v633 = vrot.slane %v632, 1
        %v634 = vadd.f32 %v632, %v633
        %635 = vmatprep.subr.mxu0 0.0
        %636 = vmatpush1.msra.mxu0 %v218
        %637 = vmatprep.subr.mxu0 0.0
        %638 = vmatpush1.msra.mxu0 %v219
        %639 = vmatprep.subr.mxu0 0.0
        %640 = vmatpush1.msra.mxu0 %v220
        %641 = vmatprep.subr.mxu0 0.0
        %642 = vmatpush1.msra.mxu0 %v221
        %643 = vmatprep.subr.mxu0 0.0
        %644 = vmatpush1.msra.mxu0 %v222
        %645 = vmatprep.subr.mxu0 0.0
        %646 = vmatpush1.msra.mxu0 %v223
        %647 = vmatprep.subr.mxu0 0.0
        %648 = vmatpush1.msra.mxu0 %v224
        %649 = vmatprep.subr.mxu0 0.0
        %650 = vmatpush1.msra.mxu0 %v225
        %651 = vmatprep.subr.mxu0 0.0
        %652 = vmatpush1.msra.mxu0 %v226
        %653 = vmatprep.subr.mxu0 0.0
        %654 = vmatpush1.msra.mxu0 %v227
        %655 = vmatprep.subr.mxu0 0.0
        %656 = vmatpush1.msra.mxu0 %v228
        %657 = vmatprep.subr.mxu0 0.0
        %658 = vmatpush1.msra.mxu0 %v229
        %659 = vmatprep.subr.mxu0 0.0
        %660 = vmatpush1.msra.mxu0 %v230
        %661 = vmatprep.subr.mxu0 0.0
        %662 = vmatpush1.msra.mxu0 %v231
        %663 = vmatprep.subr.mxu0 0.0
        %664 = vmatpush1.msra.mxu0 %v232
        %665 = vmatprep.subr.mxu0 0.0
        %666 = vmatpush1.msra.mxu0 %v233
        %667 = vmatprep.subr.mxu0 0.0
        %668 = vmatpush1.msra.mxu0 0.0
        %669 = vmatprep.subr.mxu0 0.0
        %670 = vmatpush1.msra.mxu0 0.0
        %671 = vmatprep.subr.mxu0 0.0
        %672 = vmatpush1.msra.mxu0 0.0
        %673 = vmatprep.subr.mxu0 0.0
        %674 = vmatpush1.msra.mxu0 0.0
        %675 = vmatprep.subr.mxu0 0.0
        %676 = vmatpush1.msra.mxu0 0.0
        %677 = vmatprep.subr.mxu0 0.0
        %678 = vmatpush1.msra.mxu0 0.0
        %679 = vmatprep.subr.mxu0 0.0
        %680 = vmatpush1.msra.mxu0 0.0
        %681 = vmatprep.subr.mxu0 0.0
        %682 = vmatpush1.msra.mxu0 0.0
        %683 = vmatprep.subr.mxu0 0.0
        %684 = vmatpush1.msra.mxu0 0.0
        %685 = vmatprep.subr.mxu0 0.0
        %686 = vmatpush1.msra.mxu0 0.0
        %687 = vmatprep.subr.mxu0 0.0
        %688 = vmatpush1.msra.mxu0 0.0
        %689 = vmatprep.subr.mxu0 0.0
        %690 = vmatpush1.msra.mxu0 0.0
        %691 = vmatprep.subr.mxu0 0.0
        %692 = vmatpush1.msra.mxu0 0.0
        %693 = vmatprep.subr.mxu0 0.0
        %694 = vmatpush1.msra.mxu0 0.0
        %695 = vmatprep.subr.mxu0 0.0
        %696 = vmatpush1.msra.mxu0 0.0
        %697 = vmatprep.subr.mxu0 0.0
        %698 = vmatpush1.msra.mxu0 0.0
        %699 = vmatprep.mubr.f32.mxu0 0.0
        %700 = vmatmul.mubr.f32.gmra.mrb[0].mxu0 %v634
        %v701 = vpop.f32.mrb[0].mxu0
        %v702 = vadd.f32 0.0, %v701
        %v703 = vpop.f32.mrb[0].mxu0
        %704 = vdwg.mxu0
        %v705 = vmul.f32 %v702, 0.00390625
        %v706 = vadd.f32 %v705, 1e-05
        %v707 = vrsqrt.pop %v706
        %v708 = vlaneseq
        %v709 = vshrl.u32 %v708, 7
        %v710 = vsub.s32 0, %v709
        %v711 = vrot.slane %v707, %v710
        %v712 = vmul.f32 %v624, %v711
        %v713 = vmul.f32 %v625, %v711
        %v714 = vmax.f32 %v712, 0.0
        %v715 = vmax.f32 %v713, 0.0
        %v718 = vrot.slane %v714, 7
        %v719 = vrot.slane %v715, 7
        %v720 = vsel %vm238, %v718, %v719
        %v724 = vsel %vm238, 0.0, %v718
        %v725 = vsel %vm238, %v719, 0.0
        %s726 = scalar_lea.vmem [#allocation5], 384
        %v727 = vld [vmem:[%s726] sm:$0xff]
        %v728 = vld [vmem:[%s726 + $0x8] sm:$0xff]
        %v729 = vld [vmem:[%s726 + $0x10] sm:$0xff]
        %v730 = vld [vmem:[%s726 + $0x18] sm:$0xff]
        %v731 = vld [vmem:[%s726 + $0x20] sm:$0xff]
        %v732 = vld [vmem:[%s726 + $0x28] sm:$0xff]
        %v733 = vld [vmem:[%s726 + $0x30] sm:$0xff]
        %v734 = vld [vmem:[%s726 + $0x38] sm:$0xff]
        %v735 = vld [vmem:[%s726 + $0x40] sm:$0xff]
        %v736 = vld [vmem:[%s726 + $0x48] sm:$0xff]
        %v737 = vld [vmem:[%s726 + $0x50] sm:$0xff]
        %v738 = vld [vmem:[%s726 + $0x58] sm:$0xff]
        %v739 = vld [vmem:[%s726 + $0x60] sm:$0xff]
        %v740 = vld [vmem:[%s726 + $0x68] sm:$0xff]
        %v741 = vld [vmem:[%s726 + $0x70] sm:$0xff]
        %v742 = vld [vmem:[%s726 + $0x78] sm:$0xff]
        %s743 = scalar_lea.vmem [#allocation5], 512
        %v744 = vld [vmem:[%s743] sm:$0xff]
        %v745 = vld [vmem:[%s743 + $0x8] sm:$0xff]
        %v746 = vld [vmem:[%s743 + $0x10] sm:$0xff]
        %v747 = vld [vmem:[%s743 + $0x18] sm:$0xff]
        %v748 = vld [vmem:[%s743 + $0x20] sm:$0xff]
        %v749 = vld [vmem:[%s743 + $0x28] sm:$0xff]
        %v750 = vld [vmem:[%s743 + $0x30] sm:$0xff]
        %v751 = vld [vmem:[%s743 + $0x38] sm:$0xff]
        %v752 = vld [vmem:[%s743 + $0x40] sm:$0xff]
        %v753 = vld [vmem:[%s743 + $0x48] sm:$0xff]
        %v754 = vld [vmem:[%s743 + $0x50] sm:$0xff]
        %v755 = vld [vmem:[%s743 + $0x58] sm:$0xff]
        %v756 = vld [vmem:[%s743 + $0x60] sm:$0xff]
        %v757 = vld [vmem:[%s743 + $0x68] sm:$0xff]
        %v758 = vld [vmem:[%s743 + $0x70] sm:$0xff]
        %v759 = vld [vmem:[%s743 + $0x78] sm:$0xff]
        %v762 = vrot.slane %v724, 1
        %v763 = vrot.slane %v720, 1
        %v764 = vsel %vm282, %v762, %v763
        %v765 = vrot.slane %v725, 1
        %v766 = vsel %vm282, %v763, %v765
        %769 = vmatprep.subr.mxu0 0.0
        %770 = vmatpush1.msra.mxu0 %v744
        %771 = vmatprep.subr.mxu0 0.0
        %772 = vmatpush1.msra.mxu0 %v745
        %773 = vmatprep.subr.mxu0 0.0
        %774 = vmatpush1.msra.mxu0 %v746
        %775 = vmatprep.subr.mxu0 0.0
        %776 = vmatpush1.msra.mxu0 %v747
        %777 = vmatprep.subr.mxu0 0.0
        %778 = vmatpush1.msra.mxu0 %v748
        %779 = vmatprep.subr.mxu0 0.0
        %780 = vmatpush1.msra.mxu0 %v749
        %781 = vmatprep.subr.mxu0 0.0
        %782 = vmatpush1.msra.mxu0 %v750
        %783 = vmatprep.subr.mxu0 0.0
        %784 = vmatpush1.msra.mxu0 %v751
        %785 = vmatprep.subr.mxu0 0.0
        %786 = vmatpush1.msra.mxu0 %v752
        %787 = vmatprep.subr.mxu0 0.0
        %788 = vmatpush1.msra.mxu0 %v753
        %789 = vmatprep.subr.mxu0 0.0
        %790 = vmatpush1.msra.mxu0 %v754
        %791 = vmatprep.subr.mxu0 0.0
        %792 = vmatpush1.msra.mxu0 %v755
        %793 = vmatprep.subr.mxu0 0.0
        %794 = vmatpush1.msra.mxu0 %v756
        %795 = vmatprep.subr.mxu0 0.0
        %796 = vmatpush1.msra.mxu0 %v757
        %797 = vmatprep.subr.mxu0 0.0
        %798 = vmatpush1.msra.mxu0 %v758
        %799 = vmatprep.subr.mxu0 0.0
        %800 = vmatpush1.msra.mxu0 %v759
        %801 = vmatprep.subr.mxu0 0.0
        %802 = vmatpush1.msra.mxu0 0.0
        %803 = vmatprep.subr.mxu0 0.0
        %804 = vmatpush1.msra.mxu0 0.0
        %805 = vmatprep.subr.mxu0 0.0
        %806 = vmatpush1.msra.mxu0 0.0
        %807 = vmatprep.subr.mxu0 0.0
        %808 = vmatpush1.msra.mxu0 0.0
        %809 = vmatprep.subr.mxu0 0.0
        %810 = vmatpush1.msra.mxu0 0.0
        %811 = vmatprep.subr.mxu0 0.0
        %812 = vmatpush1.msra.mxu0 0.0
        %813 = vmatprep.subr.mxu0 0.0
        %814 = vmatpush1.msra.mxu0 0.0
        %815 = vmatprep.subr.mxu0 0.0
        %816 = vmatpush1.msra.mxu0 0.0
        %817 = vmatprep.subr.mxu0 0.0
        %818 = vmatpush1.msra.mxu0 0.0
        %819 = vmatprep.subr.mxu0 0.0
        %820 = vmatpush1.msra.mxu0 0.0
        %821 = vmatprep.subr.mxu0 0.0
        %822 = vmatpush1.msra.mxu0 0.0
        %823 = vmatprep.subr.mxu0 0.0
        %824 = vmatpush1.msra.mxu0 0.0
        %825 = vmatprep.subr.mxu0 0.0
        %826 = vmatpush1.msra.mxu0 0.0
        %827 = vmatprep.subr.mxu0 0.0
        %828 = vmatpush1.msra.mxu0 0.0
        %829 = vmatprep.subr.mxu0 0.0
        %830 = vmatpush1.msra.mxu0 0.0
        %831 = vmatprep.subr.mxu0 0.0
        %832 = vmatpush1.msra.mxu0 0.0
        %833 = vmatprep.mubr.f32.mxu0 0.0
        %834 = vmatmul.mubr.f32.gmra.mrb[0].mxu0 %v764
        %v835 = vpop.f32.mrb[0].mxu0
        %v836 = vadd.f32 0.0, %v835
        %v837 = vpop.f32.mrb[0].mxu0
        %838 = vmatprep.mubr.f32.mxu0 0.0
        %839 = vmatmul.mubr.f32.gmra.mrb[0].mxu0 %v766
        %v840 = vpop.f32.mrb[0].mxu0
        %v841 = vadd.f32 0.0, %v840
        %v842 = vpop.f32.mrb[0].mxu0
        %843 = vdwg.mxu0
        %844 = vmatprep.subr.mxu0 0.0
        %845 = vmatpush1.msra.mxu0 %v727
        %846 = vmatprep.subr.mxu0 0.0
        %847 = vmatpush1.msra.mxu0 %v728
        %848 = vmatprep.subr.mxu0 0.0
        %849 = vmatpush1.msra.mxu0 %v729
        %850 = vmatprep.subr.mxu0 0.0
        %851 = vmatpush1.msra.mxu0 %v730
        %852 = vmatprep.subr.mxu0 0.0
        %853 = vmatpush1.msra.mxu0 %v731
        %854 = vmatprep.subr.mxu0 0.0
        %855 = vmatpush1.msra.mxu0 %v732
        %856 = vmatprep.subr.mxu0 0.0
        %857 = vmatpush1.msra.mxu0 %v733
        %858 = vmatprep.subr.mxu0 0.0
        %859 = vmatpush1.msra.mxu0 %v734
        %860 = vmatprep.subr.mxu0 0.0
        %861 = vmatpush1.msra.mxu0 %v735
        %862 = vmatprep.subr.mxu0 0.0
        %863 = vmatpush1.msra.mxu0 %v736
        %864 = vmatprep.subr.mxu0 0.0
        %865 = vmatpush1.msra.mxu0 %v737
        %866 = vmatprep.subr.mxu0 0.0
        %867 = vmatpush1.msra.mxu0 %v738
        %868 = vmatprep.subr.mxu0 0.0
        %869 = vmatpush1.msra.mxu0 %v739
        %870 = vmatprep.subr.mxu0 0.0
        %871 = vmatpush1.msra.mxu0 %v740
        %872 = vmatprep.subr.mxu0 0.0
        %873 = vmatpush1.msra.mxu0 %v741
        %874 = vmatprep.subr.mxu0 0.0
        %875 = vmatpush1.msra.mxu0 %v742
        %876 = vmatprep.subr.mxu0 0.0
        %877 = vmatpush1.msra.mxu0 0.0
        %878 = vmatprep.subr.mxu0 0.0
        %879 = vmatpush1.msra.mxu0 0.0
        %880 = vmatprep.subr.mxu0 0.0
        %881 = vmatpush1.msra.mxu0 0.0
        %882 = vmatprep.subr.mxu0 0.0
        %883 = vmatpush1.msra.mxu0 0.0
        %884 = vmatprep.subr.mxu0 0.0
        %885 = vmatpush1.msra.mxu0 0.0
        %886 = vmatprep.subr.mxu0 0.0
        %887 = vmatpush1.msra.mxu0 0.0
        %888 = vmatprep.subr.mxu0 0.0
        %889 = vmatpush1.msra.mxu0 0.0
        %890 = vmatprep.subr.mxu0 0.0
        %891 = vmatpush1.msra.mxu0 0.0
        %892 = vmatprep.subr.mxu0 0.0
        %893 = vmatpush1.msra.mxu0 0.0
        %894 = vmatprep.subr.mxu0 0.0
        %895 = vmatpush1.msra.mxu0 0.0
        %896 = vmatprep.subr.mxu0 0.0
        %897 = vmatpush1.msra.mxu0 0.0
        %898 = vmatprep.subr.mxu0 0.0
        %899 = vmatpush1.msra.mxu0 0.0
        %900 = vmatprep.subr.mxu0 0.0
        %901 = vmatpush1.msra.mxu0 0.0
        %902 = vmatprep.subr.mxu0 0.0
        %903 = vmatpush1.msra.mxu0 0.0
        %904 = vmatprep.subr.mxu0 0.0
        %905 = vmatpush1.msra.mxu0 0.0
        %906 = vmatprep.subr.mxu0 0.0
        %907 = vmatpush1.msra.mxu0 0.0
        %908 = vmatprep.mubr.f32.mxu0 0.0
        %909 = vmatmul.mubr.f32.gmra.mrb[0].mxu0 %v724
        %v910 = vpop.f32.mrb[0].mxu0
        %v911 = vadd.f32 %v836, %v910
        %v912 = vpop.f32.mrb[0].mxu0
        %913 = vmatprep.mubr.f32.mxu0 0.0
        %914 = vmatmul.mubr.f32.gmra.mrb[0].mxu0 %v720
        %v915 = vpop.f32.mrb[0].mxu0
        %v916 = vadd.f32 %v841, %v915
        %v917 = vpop.f32.mrb[0].mxu0
        %918 = vdwg.mxu0
        %s919 = scalar_lea.vmem [#allocation5], 640
        %v920 = vld [vmem:[%s919] sm:$0xff]
        %v921 = vld [vmem:[%s919 + $0x8] sm:$0xff]
        %v922 = vld [vmem:[%s919 + $0x10] sm:$0xff]
        %v923 = vld [vmem:[%s919 + $0x18] sm:$0xff]
        %v924 = vld [vmem:[%s919 + $0x20] sm:$0xff]
        %v925 = vld [vmem:[%s919 + $0x28] sm:$0xff]
        %v926 = vld [vmem:[%s919 + $0x30] sm:$0xff]
        %v927 = vld [vmem:[%s919 + $0x38] sm:$0xff]
        %v928 = vld [vmem:[%s919 + $0x40] sm:$0xff]
        %v929 = vld [vmem:[%s919 + $0x48] sm:$0xff]
        %v930 = vld [vmem:[%s919 + $0x50] sm:$0xff]
        %v931 = vld [vmem:[%s919 + $0x58] sm:$0xff]
        %v932 = vld [vmem:[%s919 + $0x60] sm:$0xff]
        %v933 = vld [vmem:[%s919 + $0x68] sm:$0xff]
        %v934 = vld [vmem:[%s919 + $0x70] sm:$0xff]
        %v935 = vld [vmem:[%s919 + $0x78] sm:$0xff]
        %v936 = vrot.slane %v724, 2
        %v937 = vrot.slane %v720, 2
        %v938 = vsel %vm457, %v936, %v937
        %v939 = vrot.slane %v725, 2
        %v940 = vsel %vm457, %v937, %v939
        %943 = vmatprep.subr.mxu0 0.0
        %944 = vmatpush1.msra.mxu0 %v920
        %945 = vmatprep.subr.mxu0 0.0
        %946 = vmatpush1.msra.mxu0 %v921
        %947 = vmatprep.subr.mxu0 0.0
        %948 = vmatpush1.msra.mxu0 %v922
        %949 = vmatprep.subr.mxu0 0.0
        %950 = vmatpush1.msra.mxu0 %v923
        %951 = vmatprep.subr.mxu0 0.0
        %952 = vmatpush1.msra.mxu0 %v924
        %953 = vmatprep.subr.mxu0 0.0
        %954 = vmatpush1.msra.mxu0 %v925
        %955 = vmatprep.subr.mxu0 0.0
        %956 = vmatpush1.msra.mxu0 %v926
        %957 = vmatprep.subr.mxu0 0.0
        %958 = vmatpush1.msra.mxu0 %v927
        %959 = vmatprep.subr.mxu0 0.0
        %960 = vmatpush1.msra.mxu0 %v928
        %961 = vmatprep.subr.mxu0 0.0
        %962 = vmatpush1.msra.mxu0 %v929
        %963 = vmatprep.subr.mxu0 0.0
        %964 = vmatpush1.msra.mxu0 %v930
        %965 = vmatprep.subr.mxu0 0.0
        %966 = vmatpush1.msra.mxu0 %v931
        %967 = vmatprep.subr.mxu0 0.0
        %968 = vmatpush1.msra.mxu0 %v932
        %969 = vmatprep.subr.mxu0 0.0
        %970 = vmatpush1.msra.mxu0 %v933
        %971 = vmatprep.subr.mxu0 0.0
        %972 = vmatpush1.msra.mxu0 %v934
        %973 = vmatprep.subr.mxu0 0.0
        %974 = vmatpush1.msra.mxu0 %v935
        %975 = vmatprep.subr.mxu0 0.0
        %976 = vmatpush1.msra.mxu0 0.0
        %977 = vmatprep.subr.mxu0 0.0
        %978 = vmatpush1.msra.mxu0 0.0
        %979 = vmatprep.subr.mxu0 0.0
        %980 = vmatpush1.msra.mxu0 0.0
        %981 = vmatprep.subr.mxu0 0.0
        %982 = vmatpush1.msra.mxu0 0.0
        %983 = vmatprep.subr.mxu0 0.0
        %984 = vmatpush1.msra.mxu0 0.0
        %985 = vmatprep.subr.mxu0 0.0
        %986 = vmatpush1.msra.mxu0 0.0
        %987 = vmatprep.subr.mxu0 0.0
        %988 = vmatpush1.msra.mxu0 0.0
        %989 = vmatprep.subr.mxu0 0.0
        %990 = vmatpush1.msra.mxu0 0.0
        %991 = vmatprep.subr.mxu0 0.0
        %992 = vmatpush1.msra.mxu0 0.0
        %993 = vmatprep.subr.mxu0 0.0
        %994 = vmatpush1.msra.mxu0 0.0
        %995 = vmatprep.subr.mxu0 0.0
        %996 = vmatpush1.msra.mxu0 0.0
        %997 = vmatprep.subr.mxu0 0.0
        %998 = vmatpush1.msra.mxu0 0.0
        %999 = vmatprep.subr.mxu0 0.0
        %1000 = vmatpush1.msra.mxu0 0.0
        %1001 = vmatprep.subr.mxu0 0.0
        %1002 = vmatpush1.msra.mxu0 0.0
        %1003 = vmatprep.subr.mxu0 0.0
        %1004 = vmatpush1.msra.mxu0 0.0
        %1005 = vmatprep.subr.mxu0 0.0
        %1006 = vmatpush1.msra.mxu0 0.0
        %1007 = vmatprep.mubr.f32.mxu0 0.0
        %1008 = vmatmul.mubr.f32.gmra.mrb[0].mxu0 %v938
        %v1009 = vpop.f32.mrb[0].mxu0
        %v1010 = vadd.f32 0.0, %v1009
        %v1011 = vpop.f32.mrb[0].mxu0
        %1012 = vmatprep.mubr.f32.mxu0 0.0
        %1013 = vmatmul.mubr.f32.gmra.mrb[0].mxu0 %v940
        %v1014 = vpop.f32.mrb[0].mxu0
        %v1015 = vadd.f32 0.0, %v1014
        %v1016 = vpop.f32.mrb[0].mxu0
        %1017 = vdwg.mxu0
        %v1018 = vadd.f32 %v911, %v1010
        %v1019 = vadd.f32 %v916, %v1015
        %v1020 = vadd.f32 %v1018, %v1019
        %v1021 = vrot.slane %v1020, 4
        %v1022 = vadd.f32 %v1020, %v1021
        %v1023 = vrot.slane %v1022, 2
        %v1024 = vadd.f32 %v1022, %v1023
        %v1025 = vrot.slane %v1024, 1
        %v1026 = vadd.f32 %v1024, %v1025
        %1027 = vmatprep.subr.mxu0 0.0
        %1028 = vmatpush1.msra.mxu0 %v218
        %1029 = vmatprep.subr.mxu0 0.0
        %1030 = vmatpush1.msra.mxu0 %v219
        %1031 = vmatprep.subr.mxu0 0.0
        %1032 = vmatpush1.msra.mxu0 %v220
        %1033 = vmatprep.subr.mxu0 0.0
        %1034 = vmatpush1.msra.mxu0 %v221
        %1035 = vmatprep.subr.mxu0 0.0
        %1036 = vmatpush1.msra.mxu0 %v222
        %1037 = vmatprep.subr.mxu0 0.0
        %1038 = vmatpush1.msra.mxu0 %v223
        %1039 = vmatprep.subr.mxu0 0.0
        %1040 = vmatpush1.msra.mxu0 %v224
        %1041 = vmatprep.subr.mxu0 0.0
        %1042 = vmatpush1.msra.mxu0 %v225
        %1043 = vmatprep.subr.mxu0 0.0
        %1044 = vmatpush1.msra.mxu0 %v226
        %1045 = vmatprep.subr.mxu0 0.0
        %1046 = vmatpush1.msra.mxu0 %v227
        %1047 = vmatprep.subr.mxu0 0.0
        %1048 = vmatpush1.msra.mxu0 %v228
        %1049 = vmatprep.subr.mxu0 0.0
        %1050 = vmatpush1.msra.mxu0 %v229
        %1051 = vmatprep.subr.mxu0 0.0
        %1052 = vmatpush1.msra.mxu0 %v230
        %1053 = vmatprep.subr.mxu0 0.0
        %1054 = vmatpush1.msra.mxu0 %v231
        %1055 = vmatprep.subr.mxu0 0.0
        %1056 = vmatpush1.msra.mxu0 %v232
        %1057 = vmatprep.subr.mxu0 0.0
        %1058 = vmatpush1.msra.mxu0 %v233
        %1059 = vmatprep.subr.mxu0 0.0
        %1060 = vmatpush1.msra.mxu0 0.0
        %1061 = vmatprep.subr.mxu0 0.0
        %1062 = vmatpush1.msra.mxu0 0.0
        %1063 = vmatprep.subr.mxu0 0.0
        %1064 = vmatpush1.msra.mxu0 0.0
        %1065 = vmatprep.subr.mxu0 0.0
        %1066 = vmatpush1.msra.mxu0 0.0
        %1067 = vmatprep.subr.mxu0 0.0
        %1068 = vmatpush1.msra.mxu0 0.0
        %1069 = vmatprep.subr.mxu0 0.0
        %1070 = vmatpush1.msra.mxu0 0.0
        %1071 = vmatprep.subr.mxu0 0.0
        %1072 = vmatpush1.msra.mxu0 0.0
        %1073 = vmatprep.subr.mxu0 0.0
        %1074 = vmatpush1.msra.mxu0 0.0
        %1075 = vmatprep.subr.mxu0 0.0
        %1076 = vmatpush1.msra.mxu0 0.0
        %1077 = vmatprep.subr.mxu0 0.0
        %1078 = vmatpush1.msra.mxu0 0.0
        %1079 = vmatprep.subr.mxu0 0.0
        %1080 = vmatpush1.msra.mxu0 0.0
        %1081 = vmatprep.subr.mxu0 0.0
        %1082 = vmatpush1.msra.mxu0 0.0
        %1083 = vmatprep.subr.mxu0 0.0
        %1084 = vmatpush1.msra.mxu0 0.0
        %1085 = vmatprep.subr.mxu0 0.0
        %1086 = vmatpush1.msra.mxu0 0.0
        %1087 = vmatprep.subr.mxu0 0.0
        %1088 = vmatpush1.msra.mxu0 0.0
        %1089 = vmatprep.subr.mxu0 0.0
        %1090 = vmatpush1.msra.mxu0 0.0
        %1091 = vmatprep.mubr.f32.mxu0 0.0
        %1092 = vmatmul.mubr.f32.gmra.mrb[0].mxu0 %v1026
        %v1093 = vpop.f32.mrb[0].mxu0
        %v1094 = vadd.f32 0.0, %v1093
        %v1095 = vpop.f32.mrb[0].mxu0
        %1096 = vdwg.mxu0
        %v1097 = vmul.f32 %v1094, 0.00390625
        %v1098 = vlaneseq
        %v1099 = vshrl.u32 %v1098, 7
        %v1100 = vsub.s32 0, %v1099
        %v1101 = vrot.slane %v1097, %v1100
        %v1102 = vsub.f32 %v1018, %v1101
        %v1103 = vsub.f32 %v1019, %v1101
        %v1104 = vmul.f32 %v1102, %v1102
        %v1105 = vmul.f32 %v1103, %v1103
        %v1106 = vadd.f32 %v1104, %v1105
        %v1107 = vrot.slane %v1106, 4
        %v1108 = vadd.f32 %v1106, %v1107
        %v1109 = vrot.slane %v1108, 2
        %v1110 = vadd.f32 %v1108, %v1109
        %v1111 = vrot.slane %v1110, 1
        %v1112 = vadd.f32 %v1110, %v1111
        %1113 = vmatprep.subr.mxu0 0.0
        %1114 = vmatpush1.msra.mxu0 %v218
        %1115 = vmatprep.subr.mxu0 0.0
        %1116 = vmatpush1.msra.mxu0 %v219
        %1117 = vmatprep.subr.mxu0 0.0
        %1118 = vmatpush1.msra.mxu0 %v220
        %1119 = vmatprep.subr.mxu0 0.0
        %1120 = vmatpush1.msra.mxu0 %v221
        %1121 = vmatprep.subr.mxu0 0.0
        %1122 = vmatpush1.msra.mxu0 %v222
        %1123 = vmatprep.subr.mxu0 0.0
        %1124 = vmatpush1.msra.mxu0 %v223
        %1125 = vmatprep.subr.mxu0 0.0
        %1126 = vmatpush1.msra.mxu0 %v224
        %1127 = vmatprep.subr.mxu0 0.0
        %1128 = vmatpush1.msra.mxu0 %v225
        %1129 = vmatprep.subr.mxu0 0.0
        %1130 = vmatpush1.msra.mxu0 %v226
        %1131 = vmatprep.subr.mxu0 0.0
        %1132 = vmatpush1.msra.mxu0 %v227
        %1133 = vmatprep.subr.mxu0 0.0
        %1134 = vmatpush1.msra.mxu0 %v228
        %1135 = vmatprep.subr.mxu0 0.0
        %1136 = vmatpush1.msra.mxu0 %v229
        %1137 = vmatprep.subr.mxu0 0.0
        %1138 = vmatpush1.msra.mxu0 %v230
        %1139 = vmatprep.subr.mxu0 0.0
        %1140 = vmatpush1.msra.mxu0 %v231
        %1141 = vmatprep.subr.mxu0 0.0
        %1142 = vmatpush1.msra.mxu0 %v232
        %1143 = vmatprep.subr.mxu0 0.0
        %1144 = vmatpush1.msra.mxu0 %v233
        %1145 = vmatprep.subr.mxu0 0.0
        %1146 = vmatpush1.msra.mxu0 0.0
        %1147 = vmatprep.subr.mxu0 0.0
        %1148 = vmatpush1.msra.mxu0 0.0
        %1149 = vmatprep.subr.mxu0 0.0
        %1150 = vmatpush1.msra.mxu0 0.0
        %1151 = vmatprep.subr.mxu0 0.0
        %1152 = vmatpush1.msra.mxu0 0.0
        %1153 = vmatprep.subr.mxu0 0.0
        %1154 = vmatpush1.msra.mxu0 0.0
        %1155 = vmatprep.subr.mxu0 0.0
        %1156 = vmatpush1.msra.mxu0 0.0
        %1157 = vmatprep.subr.mxu0 0.0
        %1158 = vmatpush1.msra.mxu0 0.0
        %1159 = vmatprep.subr.mxu0 0.0
        %1160 = vmatpush1.msra.mxu0 0.0
        %1161 = vmatprep.subr.mxu0 0.0
        %1162 = vmatpush1.msra.mxu0 0.0
        %1163 = vmatprep.subr.mxu0 0.0
        %1164 = vmatpush1.msra.mxu0 0.0
        %1165 = vmatprep.subr.mxu0 0.0
        %1166 = vmatpush1.msra.mxu0 0.0
        %1167 = vmatprep.subr.mxu0 0.0
        %1168 = vmatpush1.msra.mxu0 0.0
        %1169 = vmatprep.subr.mxu0 0.0
        %1170 = vmatpush1.msra.mxu0 0.0
        %1171 = vmatprep.subr.mxu0 0.0
        %1172 = vmatpush1.msra.mxu0 0.0
        %1173 = vmatprep.subr.mxu0 0.0
        %1174 = vmatpush1.msra.mxu0 0.0
        %1175 = vmatprep.subr.mxu0 0.0
        %1176 = vmatpush1.msra.mxu0 0.0
        %1177 = vmatprep.mubr.f32.mxu0 0.0
        %1178 = vmatmul.mubr.f32.gmra.mrb[0].mxu0 %v1112
        %v1179 = vpop.f32.mrb[0].mxu0
        %v1180 = vadd.f32 0.0, %v1179
        %v1181 = vpop.f32.mrb[0].mxu0
        %1182 = vdwg.mxu0
        %v1183 = vmul.f32 %v1180, 0.00390625
        %v1184 = vadd.f32 %v1183, 1e-05
        %v1185 = vrsqrt.pop %v1184
        %v1186 = vlaneseq
        %v1187 = vshrl.u32 %v1186, 7
        %v1188 = vsub.s32 0, %v1187
        %v1189 = vrot.slane %v1185, %v1188
        %v1190 = vmul.f32 %v1102, %v1189
        %v1191 = vmul.f32 %v1103, %v1189
        %v1192 = vadd.f32 %v1190, %v234
        %v1193 = vadd.f32 %v1191, %v235
        %v1196 = vrot.slane %v1192, 7
        %v1197 = vrot.slane %v1193, 7
        %v1198 = vsel %vm238, %v1196, %v1197
        %v1202 = vsel %vm238, 0.0, %v1196
        %v1203 = vsel %vm238, %v1197, 0.0
        %s1204 = scalar_lea.vmem [#allocation5], 768
        %v1205 = vld [vmem:[%s1204] sm:$0xff]
        %v1206 = vld [vmem:[%s1204 + $0x8] sm:$0xff]
        %v1207 = vld [vmem:[%s1204 + $0x10] sm:$0xff]
        %v1208 = vld [vmem:[%s1204 + $0x18] sm:$0xff]
        %v1209 = vld [vmem:[%s1204 + $0x20] sm:$0xff]
        %v1210 = vld [vmem:[%s1204 + $0x28] sm:$0xff]
        %v1211 = vld [vmem:[%s1204 + $0x30] sm:$0xff]
        %v1212 = vld [vmem:[%s1204 + $0x38] sm:$0xff]
        %v1213 = vld [vmem:[%s1204 + $0x40] sm:$0xff]
        %v1214 = vld [vmem:[%s1204 + $0x48] sm:$0xff]
        %v1215 = vld [vmem:[%s1204 + $0x50] sm:$0xff]
        %v1216 = vld [vmem:[%s1204 + $0x58] sm:$0xff]
        %v1217 = vld [vmem:[%s1204 + $0x60] sm:$0xff]
        %v1218 = vld [vmem:[%s1204 + $0x68] sm:$0xff]
        %v1219 = vld [vmem:[%s1204 + $0x70] sm:$0xff]
        %v1220 = vld [vmem:[%s1204 + $0x78] sm:$0xff]
        %s1221 = scalar_lea.vmem [#allocation5], 896
        %v1222 = vld [vmem:[%s1221] sm:$0xff]
        %v1223 = vld [vmem:[%s1221 + $0x8] sm:$0xff]
        %v1224 = vld [vmem:[%s1221 + $0x10] sm:$0xff]
        %v1225 = vld [vmem:[%s1221 + $0x18] sm:$0xff]
        %v1226 = vld [vmem:[%s1221 + $0x20] sm:$0xff]
        %v1227 = vld [vmem:[%s1221 + $0x28] sm:$0xff]
        %v1228 = vld [vmem:[%s1221 + $0x30] sm:$0xff]
        %v1229 = vld [vmem:[%s1221 + $0x38] sm:$0xff]
        %v1230 = vld [vmem:[%s1221 + $0x40] sm:$0xff]
        %v1231 = vld [vmem:[%s1221 + $0x48] sm:$0xff]
        %v1232 = vld [vmem:[%s1221 + $0x50] sm:$0xff]
        %v1233 = vld [vmem:[%s1221 + $0x58] sm:$0xff]
        %v1234 = vld [vmem:[%s1221 + $0x60] sm:$0xff]
        %v1235 = vld [vmem:[%s1221 + $0x68] sm:$0xff]
        %v1236 = vld [vmem:[%s1221 + $0x70] sm:$0xff]
        %v1237 = vld [vmem:[%s1221 + $0x78] sm:$0xff]
        %v1240 = vrot.slane %v1202, 1
        %v1241 = vrot.slane %v1198, 1
        %v1242 = vsel %vm282, %v1240, %v1241
        %v1243 = vrot.slane %v1203, 1
        %v1244 = vsel %vm282, %v1241, %v1243
        %1247 = vmatprep.subr.mxu0 0.0
        %1248 = vmatpush1.msra.mxu0 %v1222
        %1249 = vmatprep.subr.mxu0 0.0
        %1250 = vmatpush1.msra.mxu0 %v1223
        %1251 = vmatprep.subr.mxu0 0.0
        %1252 = vmatpush1.msra.mxu0 %v1224
        %1253 = vmatprep.subr.mxu0 0.0
        %1254 = vmatpush1.msra.mxu0 %v1225
        %1255 = vmatprep.subr.mxu0 0.0
        %1256 = vmatpush1.msra.mxu0 %v1226
        %1257 = vmatprep.subr.mxu0 0.0
        %1258 = vmatpush1.msra.mxu0 %v1227
        %1259 = vmatprep.subr.mxu0 0.0
        %1260 = vmatpush1.msra.mxu0 %v1228
        %1261 = vmatprep.subr.mxu0 0.0
        %1262 = vmatpush1.msra.mxu0 %v1229
        %1263 = vmatprep.subr.mxu0 0.0
        %1264 = vmatpush1.msra.mxu0 %v1230
        %1265 = vmatprep.subr.mxu0 0.0
        %1266 = vmatpush1.msra.mxu0 %v1231
        %1267 = vmatprep.subr.mxu0 0.0
        %1268 = vmatpush1.msra.mxu0 %v1232
        %1269 = vmatprep.subr.mxu0 0.0
        %1270 = vmatpush1.msra.mxu0 %v1233
        %1271 = vmatprep.subr.mxu0 0.0
        %1272 = vmatpush1.msra.mxu0 %v1234
        %1273 = vmatprep.subr.mxu0 0.0
        %1274 = vmatpush1.msra.mxu0 %v1235
        %1275 = vmatprep.subr.mxu0 0.0
        %1276 = vmatpush1.msra.mxu0 %v1236
        %1277 = vmatprep.subr.mxu0 0.0
        %1278 = vmatpush1.msra.mxu0 %v1237
        %1279 = vmatprep.subr.mxu0 0.0
        %1280 = vmatpush1.msra.mxu0 0.0
        %1281 = vmatprep.subr.mxu0 0.0
        %1282 = vmatpush1.msra.mxu0 0.0
        %1283 = vmatprep.subr.mxu0 0.0
        %1284 = vmatpush1.msra.mxu0 0.0
        %1285 = vmatprep.subr.mxu0 0.0
        %1286 = vmatpush1.msra.mxu0 0.0
        %1287 = vmatprep.subr.mxu0 0.0
        %1288 = vmatpush1.msra.mxu0 0.0
        %1289 = vmatprep.subr.mxu0 0.0
        %1290 = vmatpush1.msra.mxu0 0.0
        %1291 = vmatprep.subr.mxu0 0.0
        %1292 = vmatpush1.msra.mxu0 0.0
        %1293 = vmatprep.subr.mxu0 0.0
        %1294 = vmatpush1.msra.mxu0 0.0
        %1295 = vmatprep.subr.mxu0 0.0
        %1296 = vmatpush1.msra.mxu0 0.0
        %1297 = vmatprep.subr.mxu0 0.0
        %1298 = vmatpush1.msra.mxu0 0.0
        %1299 = vmatprep.subr.mxu0 0.0
        %1300 = vmatpush1.msra.mxu0 0.0
        %1301 = vmatprep.subr.mxu0 0.0
        %1302 = vmatpush1.msra.mxu0 0.0
        %1303 = vmatprep.subr.mxu0 0.0
        %1304 = vmatpush1.msra.mxu0 0.0
        %1305 = vmatprep.subr.mxu0 0.0
        %1306 = vmatpush1.msra.mxu0 0.0
        %1307 = vmatprep.subr.mxu0 0.0
        %1308 = vmatpush1.msra.mxu0 0.0
        %1309 = vmatprep.subr.mxu0 0.0
        %1310 = vmatpush1.msra.mxu0 0.0
        %1311 = vmatprep.mubr.f32.mxu0 0.0
        %1312 = vmatmul.mubr.f32.gmra.mrb[0].mxu0 %v1242
        %v1313 = vpop.f32.mrb[0].mxu0
        %v1314 = vadd.f32 0.0, %v1313
        %v1315 = vpop.f32.mrb[0].mxu0
        %1316 = vmatprep.mubr.f32.mxu0 0.0
        %1317 = vmatmul.mubr.f32.gmra.mrb[0].mxu0 %v1244
        %v1318 = vpop.f32.mrb[0].mxu0
        %v1319 = vadd.f32 0.0, %v1318
        %v1320 = vpop.f32.mrb[0].mxu0
        %1321 = vdwg.mxu0
        %1322 = vmatprep.subr.mxu0 0.0
        %1323 = vmatpush1.msra.mxu0 %v1205
        %1324 = vmatprep.subr.mxu0 0.0
        %1325 = vmatpush1.msra.mxu0 %v1206
        %1326 = vmatprep.subr.mxu0 0.0
        %1327 = vmatpush1.msra.mxu0 %v1207
        %1328 = vmatprep.subr.mxu0 0.0
        %1329 = vmatpush1.msra.mxu0 %v1208
        %1330 = vmatprep.subr.mxu0 0.0
        %1331 = vmatpush1.msra.mxu0 %v1209
        %1332 = vmatprep.subr.mxu0 0.0
        %1333 = vmatpush1.msra.mxu0 %v1210
        %1334 = vmatprep.subr.mxu0 0.0
        %1335 = vmatpush1.msra.mxu0 %v1211
        %1336 = vmatprep.subr.mxu0 0.0
        %1337 = vmatpush1.msra.mxu0 %v1212
        %1338 = vmatprep.subr.mxu0 0.0
        %1339 = vmatpush1.msra.mxu0 %v1213
        %1340 = vmatprep.subr.mxu0 0.0
        %1341 = vmatpush1.msra.mxu0 %v1214
        %1342 = vmatprep.subr.mxu0 0.0
        %1343 = vmatpush1.msra.mxu0 %v1215
        %1344 = vmatprep.subr.mxu0 0.0
        %1345 = vmatpush1.msra.mxu0 %v1216
        %1346 = vmatprep.subr.mxu0 0.0
        %1347 = vmatpush1.msra.mxu0 %v1217
        %1348 = vmatprep.subr.mxu0 0.0
        %1349 = vmatpush1.msra.mxu0 %v1218
        %1350 = vmatprep.subr.mxu0 0.0
        %1351 = vmatpush1.msra.mxu0 %v1219
        %1352 = vmatprep.subr.mxu0 0.0
        %1353 = vmatpush1.msra.mxu0 %v1220
        %1354 = vmatprep.subr.mxu0 0.0
        %1355 = vmatpush1.msra.mxu0 0.0
        %1356 = vmatprep.subr.mxu0 0.0
        %1357 = vmatpush1.msra.mxu0 0.0
        %1358 = vmatprep.subr.mxu0 0.0
        %1359 = vmatpush1.msra.mxu0 0.0
        %1360 = vmatprep.subr.mxu0 0.0
        %1361 = vmatpush1.msra.mxu0 0.0
        %1362 = vmatprep.subr.mxu0 0.0
        %1363 = vmatpush1.msra.mxu0 0.0
        %1364 = vmatprep.subr.mxu0 0.0
        %1365 = vmatpush1.msra.mxu0 0.0
        %1366 = vmatprep.subr.mxu0 0.0
        %1367 = vmatpush1.msra.mxu0 0.0
        %1368 = vmatprep.subr.mxu0 0.0
        %1369 = vmatpush1.msra.mxu0 0.0
        %1370 = vmatprep.subr.mxu0 0.0
        %1371 = vmatpush1.msra.mxu0 0.0
        %1372 = vmatprep.subr.mxu0 0.0
        %1373 = vmatpush1.msra.mxu0 0.0
        %1374 = vmatprep.subr.mxu0 0.0
        %1375 = vmatpush1.msra.mxu0 0.0
        %1376 = vmatprep.subr.mxu0 0.0
        %1377 = vmatpush1.msra.mxu0 0.0
        %1378 = vmatprep.subr.mxu0 0.0
        %1379 = vmatpush1.msra.mxu0 0.0
        %1380 = vmatprep.subr.mxu0 0.0
        %1381 = vmatpush1.msra.mxu0 0.0
        %1382 = vmatprep.subr.mxu0 0.0
        %1383 = vmatpush1.msra.mxu0 0.0
        %1384 = vmatprep.subr.mxu0 0.0
        %1385 = vmatpush1.msra.mxu0 0.0
        %1386 = vmatprep.mubr.f32.mxu0 0.0
        %1387 = vmatmul.mubr.f32.gmra.mrb[0].mxu0 %v1202
        %v1388 = vpop.f32.mrb[0].mxu0
        %v1389 = vadd.f32 %v1314, %v1388
        %v1390 = vpop.f32.mrb[0].mxu0
        %1391 = vmatprep.mubr.f32.mxu0 0.0
        %1392 = vmatmul.mubr.f32.gmra.mrb[0].mxu0 %v1198
        %v1393 = vpop.f32.mrb[0].mxu0
        %v1394 = vadd.f32 %v1319, %v1393
        %v1395 = vpop.f32.mrb[0].mxu0
        %1396 = vdwg.mxu0
        %s1397 = scalar_lea.vmem [#allocation5], 1024
        %v1398 = vld [vmem:[%s1397] sm:$0xff]
        %v1399 = vld [vmem:[%s1397 + $0x8] sm:$0xff]
        %v1400 = vld [vmem:[%s1397 + $0x10] sm:$0xff]
        %v1401 = vld [vmem:[%s1397 + $0x18] sm:$0xff]
        %v1402 = vld [vmem:[%s1397 + $0x20] sm:$0xff]
        %v1403 = vld [vmem:[%s1397 + $0x28] sm:$0xff]
        %v1404 = vld [vmem:[%s1397 + $0x30] sm:$0xff]
        %v1405 = vld [vmem:[%s1397 + $0x38] sm:$0xff]
        %v1406 = vld [vmem:[%s1397 + $0x40] sm:$0xff]
        %v1407 = vld [vmem:[%s1397 + $0x48] sm:$0xff]
        %v1408 = vld [vmem:[%s1397 + $0x50] sm:$0xff]
        %v1409 = vld [vmem:[%s1397 + $0x58] sm:$0xff]
        %v1410 = vld [vmem:[%s1397 + $0x60] sm:$0xff]
        %v1411 = vld [vmem:[%s1397 + $0x68] sm:$0xff]
        %v1412 = vld [vmem:[%s1397 + $0x70] sm:$0xff]
        %v1413 = vld [vmem:[%s1397 + $0x78] sm:$0xff]
        %v1414 = vrot.slane %v1202, 2
        %v1415 = vrot.slane %v1198, 2
        %v1416 = vsel %vm457, %v1414, %v1415
        %v1417 = vrot.slane %v1203, 2
        %v1418 = vsel %vm457, %v1415, %v1417
        %1421 = vmatprep.subr.mxu0 0.0
        %1422 = vmatpush1.msra.mxu0 %v1398
        %1423 = vmatprep.subr.mxu0 0.0
        %1424 = vmatpush1.msra.mxu0 %v1399
        %1425 = vmatprep.subr.mxu0 0.0
        %1426 = vmatpush1.msra.mxu0 %v1400
        %1427 = vmatprep.subr.mxu0 0.0
        %1428 = vmatpush1.msra.mxu0 %v1401
        %1429 = vmatprep.subr.mxu0 0.0
        %1430 = vmatpush1.msra.mxu0 %v1402
        %1431 = vmatprep.subr.mxu0 0.0
        %1432 = vmatpush1.msra.mxu0 %v1403
        %1433 = vmatprep.subr.mxu0 0.0
        %1434 = vmatpush1.msra.mxu0 %v1404
        %1435 = vmatprep.subr.mxu0 0.0
        %1436 = vmatpush1.msra.mxu0 %v1405
        %1437 = vmatprep.subr.mxu0 0.0
        %1438 = vmatpush1.msra.mxu0 %v1406
        %1439 = vmatprep.subr.mxu0 0.0
        %1440 = vmatpush1.msra.mxu0 %v1407
        %1441 = vmatprep.subr.mxu0 0.0
        %1442 = vmatpush1.msra.mxu0 %v1408
        %1443 = vmatprep.subr.mxu0 0.0
        %1444 = vmatpush1.msra.mxu0 %v1409
        %1445 = vmatprep.subr.mxu0 0.0
        %1446 = vmatpush1.msra.mxu0 %v1410
        %1447 = vmatprep.subr.mxu0 0.0
        %1448 = vmatpush1.msra.mxu0 %v1411
        %1449 = vmatprep.subr.mxu0 0.0
        %1450 = vmatpush1.msra.mxu0 %v1412
        %1451 = vmatprep.subr.mxu0 0.0
        %1452 = vmatpush1.msra.mxu0 %v1413
        %1453 = vmatprep.subr.mxu0 0.0
        %1454 = vmatpush1.msra.mxu0 0.0
        %1455 = vmatprep.subr.mxu0 0.0
        %1456 = vmatpush1.msra.mxu0 0.0
        %1457 = vmatprep.subr.mxu0 0.0
        %1458 = vmatpush1.msra.mxu0 0.0
        %1459 = vmatprep.subr.mxu0 0.0
        %1460 = vmatpush1.msra.mxu0 0.0
        %1461 = vmatprep.subr.mxu0 0.0
        %1462 = vmatpush1.msra.mxu0 0.0
        %1463 = vmatprep.subr.mxu0 0.0
        %1464 = vmatpush1.msra.mxu0 0.0
        %1465 = vmatprep.subr.mxu0 0.0
        %1466 = vmatpush1.msra.mxu0 0.0
        %1467 = vmatprep.subr.mxu0 0.0
        %1468 = vmatpush1.msra.mxu0 0.0
        %1469 = vmatprep.subr.mxu0 0.0
        %1470 = vmatpush1.msra.mxu0 0.0
        %1471 = vmatprep.subr.mxu0 0.0
        %1472 = vmatpush1.msra.mxu0 0.0
        %1473 = vmatprep.subr.mxu0 0.0
        %1474 = vmatpush1.msra.mxu0 0.0
        %1475 = vmatprep.subr.mxu0 0.0
        %1476 = vmatpush1.msra.mxu0 0.0
        %1477 = vmatprep.subr.mxu0 0.0
        %1478 = vmatpush1.msra.mxu0 0.0
        %1479 = vmatprep.subr.mxu0 0.0
        %1480 = vmatpush1.msra.mxu0 0.0
        %1481 = vmatprep.subr.mxu0 0.0
        %1482 = vmatpush1.msra.mxu0 0.0
        %1483 = vmatprep.subr.mxu0 0.0
        %1484 = vmatpush1.msra.mxu0 0.0
        %1485 = vmatprep.mubr.f32.mxu0 0.0
        %1486 = vmatmul.mubr.f32.gmra.mrb[0].mxu0 %v1416
        %v1487 = vpop.f32.mrb[0].mxu0
        %v1488 = vadd.f32 0.0, %v1487
        %v1489 = vpop.f32.mrb[0].mxu0
        %1490 = vmatprep.mubr.f32.mxu0 0.0
        %1491 = vmatmul.mubr.f32.gmra.mrb[0].mxu0 %v1418
        %v1492 = vpop.f32.mrb[0].mxu0
        %v1493 = vadd.f32 0.0, %v1492
        %v1494 = vpop.f32.mrb[0].mxu0
        %1495 = vdwg.mxu0
        %v1496 = vadd.f32 %v1389, %v1488
        %v1497 = vadd.f32 %v1394, %v1493
        %v1498 = vadd.f32 %v1496, %v1497
        %v1499 = vrot.slane %v1498, 4
        %v1500 = vadd.f32 %v1498, %v1499
        %v1501 = vrot.slane %v1500, 2
        %v1502 = vadd.f32 %v1500, %v1501
        %v1503 = vrot.slane %v1502, 1
        %v1504 = vadd.f32 %v1502, %v1503
        %1505 = vmatprep.subr.mxu0 0.0
        %1506 = vmatpush1.msra.mxu0 %v218
        %1507 = vmatprep.subr.mxu0 0.0
        %1508 = vmatpush1.msra.mxu0 %v219
        %1509 = vmatprep.subr.mxu0 0.0
        %1510 = vmatpush1.msra.mxu0 %v220
        %1511 = vmatprep.subr.mxu0 0.0
        %1512 = vmatpush1.msra.mxu0 %v221
        %1513 = vmatprep.subr.mxu0 0.0
        %1514 = vmatpush1.msra.mxu0 %v222
        %1515 = vmatprep.subr.mxu0 0.0
        %1516 = vmatpush1.msra.mxu0 %v223
        %1517 = vmatprep.subr.mxu0 0.0
        %1518 = vmatpush1.msra.mxu0 %v224
        %1519 = vmatprep.subr.mxu0 0.0
        %1520 = vmatpush1.msra.mxu0 %v225
        %1521 = vmatprep.subr.mxu0 0.0
        %1522 = vmatpush1.msra.mxu0 %v226
        %1523 = vmatprep.subr.mxu0 0.0
        %1524 = vmatpush1.msra.mxu0 %v227
        %1525 = vmatprep.subr.mxu0 0.0
        %1526 = vmatpush1.msra.mxu0 %v228
        %1527 = vmatprep.subr.mxu0 0.0
        %1528 = vmatpush1.msra.mxu0 %v229
        %1529 = vmatprep.subr.mxu0 0.0
        %1530 = vmatpush1.msra.mxu0 %v230
        %1531 = vmatprep.subr.mxu0 0.0
        %1532 = vmatpush1.msra.mxu0 %v231
        %1533 = vmatprep.subr.mxu0 0.0
        %1534 = vmatpush1.msra.mxu0 %v232
        %1535 = vmatprep.subr.mxu0 0.0
        %1536 = vmatpush1.msra.mxu0 %v233
        %1537 = vmatprep.subr.mxu0 0.0
        %1538 = vmatpush1.msra.mxu0 0.0
        %1539 = vmatprep.subr.mxu0 0.0
        %1540 = vmatpush1.msra.mxu0 0.0
        %1541 = vmatprep.subr.mxu0 0.0
        %1542 = vmatpush1.msra.mxu0 0.0
        %1543 = vmatprep.subr.mxu0 0.0
        %1544 = vmatpush1.msra.mxu0 0.0
        %1545 = vmatprep.subr.mxu0 0.0
        %1546 = vmatpush1.msra.mxu0 0.0
        %1547 = vmatprep.subr.mxu0 0.0
        %1548 = vmatpush1.msra.mxu0 0.0
        %1549 = vmatprep.subr.mxu0 0.0
        %1550 = vmatpush1.msra.mxu0 0.0
        %1551 = vmatprep.subr.mxu0 0.0
        %1552 = vmatpush1.msra.mxu0 0.0
        %1553 = vmatprep.subr.mxu0 0.0
        %1554 = vmatpush1.msra.mxu0 0.0
        %1555 = vmatprep.subr.mxu0 0.0
        %1556 = vmatpush1.msra.mxu0 0.0
        %1557 = vmatprep.subr.mxu0 0.0
        %1558 = vmatpush1.msra.mxu0 0.0
        %1559 = vmatprep.subr.mxu0 0.0
        %1560 = vmatpush1.msra.mxu0 0.0
        %1561 = vmatprep.subr.mxu0 0.0
        %1562 = vmatpush1.msra.mxu0 0.0
        %1563 = vmatprep.subr.mxu0 0.0
        %1564 = vmatpush1.msra.mxu0 0.0
        %1565 = vmatprep.subr.mxu0 0.0
        %1566 = vmatpush1.msra.mxu0 0.0
        %1567 = vmatprep.subr.mxu0 0.0
        %1568 = vmatpush1.msra.mxu0 0.0
        %1569 = vmatprep.mubr.f32.mxu0 0.0
        %1570 = vmatmul.mubr.f32.gmra.mrb[0].mxu0 %v1504
        %v1571 = vpop.f32.mrb[0].mxu0
        %v1572 = vadd.f32 0.0, %v1571
        %v1573 = vpop.f32.mrb[0].mxu0
        %1574 = vdwg.mxu0
        %v1575 = vmul.f32 %v1572, 0.00390625
        %v1576 = vlaneseq
        %v1577 = vshrl.u32 %v1576, 7
        %v1578 = vsub.s32 0, %v1577
        %v1579 = vrot.slane %v1575, %v1578
        %v1580 = vsub.f32 %v1496, %v1579
        %v1581 = vsub.f32 %v1497, %v1579
        %v1582 = vmul.f32 %v1580, %v1580
        %v1583 = vmul.f32 %v1581, %v1581
        %v1584 = vadd.f32 %v1582, %v1583
        %v1585 = vrot.slane %v1584, 4
        %v1586 = vadd.f32 %v1584, %v1585
        %v1587 = vrot.slane %v1586, 2
        %v1588 = vadd.f32 %v1586, %v1587
        %v1589 = vrot.slane %v1588, 1
        %v1590 = vadd.f32 %v1588, %v1589
        %1591 = vmatprep.subr.mxu0 0.0
        %1592 = vmatpush1.msra.mxu0 %v218
        %1593 = vmatprep.subr.mxu0 0.0
        %1594 = vmatpush1.msra.mxu0 %v219
        %1595 = vmatprep.subr.mxu0 0.0
        %1596 = vmatpush1.msra.mxu0 %v220
        %1597 = vmatprep.subr.mxu0 0.0
        %1598 = vmatpush1.msra.mxu0 %v221
        %1599 = vmatprep.subr.mxu0 0.0
        %1600 = vmatpush1.msra.mxu0 %v222
        %1601 = vmatprep.subr.mxu0 0.0
        %1602 = vmatpush1.msra.mxu0 %v223
        %1603 = vmatprep.subr.mxu0 0.0
        %1604 = vmatpush1.msra.mxu0 %v224
        %1605 = vmatprep.subr.mxu0 0.0
        %1606 = vmatpush1.msra.mxu0 %v225
        %1607 = vmatprep.subr.mxu0 0.0
        %1608 = vmatpush1.msra.mxu0 %v226
        %1609 = vmatprep.subr.mxu0 0.0
        %1610 = vmatpush1.msra.mxu0 %v227
        %1611 = vmatprep.subr.mxu0 0.0
        %1612 = vmatpush1.msra.mxu0 %v228
        %1613 = vmatprep.subr.mxu0 0.0
        %1614 = vmatpush1.msra.mxu0 %v229
        %1615 = vmatprep.subr.mxu0 0.0
        %1616 = vmatpush1.msra.mxu0 %v230
        %1617 = vmatprep.subr.mxu0 0.0
        %1618 = vmatpush1.msra.mxu0 %v231
        %1619 = vmatprep.subr.mxu0 0.0
        %1620 = vmatpush1.msra.mxu0 %v232
        %1621 = vmatprep.subr.mxu0 0.0
        %1622 = vmatpush1.msra.mxu0 %v233
        %1623 = vmatprep.subr.mxu0 0.0
        %1624 = vmatpush1.msra.mxu0 0.0
        %1625 = vmatprep.subr.mxu0 0.0
        %1626 = vmatpush1.msra.mxu0 0.0
        %1627 = vmatprep.subr.mxu0 0.0
        %1628 = vmatpush1.msra.mxu0 0.0
        %1629 = vmatprep.subr.mxu0 0.0
        %1630 = vmatpush1.msra.mxu0 0.0
        %1631 = vmatprep.subr.mxu0 0.0
        %1632 = vmatpush1.msra.mxu0 0.0
        %1633 = vmatprep.subr.mxu0 0.0
        %1634 = vmatpush1.msra.mxu0 0.0
        %1635 = vmatprep.subr.mxu0 0.0
        %1636 = vmatpush1.msra.mxu0 0.0
        %1637 = vmatprep.subr.mxu0 0.0
        %1638 = vmatpush1.msra.mxu0 0.0
        %1639 = vmatprep.subr.mxu0 0.0
        %1640 = vmatpush1.msra.mxu0 0.0
        %1641 = vmatprep.subr.mxu0 0.0
        %1642 = vmatpush1.msra.mxu0 0.0
        %1643 = vmatprep.subr.mxu0 0.0
        %1644 = vmatpush1.msra.mxu0 0.0
        %1645 = vmatprep.subr.mxu0 0.0
        %1646 = vmatpush1.msra.mxu0 0.0
        %1647 = vmatprep.subr.mxu0 0.0
        %1648 = vmatpush1.msra.mxu0 0.0
        %1649 = vmatprep.subr.mxu0 0.0
        %1650 = vmatpush1.msra.mxu0 0.0
        %1651 = vmatprep.subr.mxu0 0.0
        %1652 = vmatpush1.msra.mxu0 0.0
        %1653 = vmatprep.subr.mxu0 0.0
        %1654 = vmatpush1.msra.mxu0 0.0
        %1655 = vmatprep.mubr.f32.mxu0 0.0
        %1656 = vmatmul.mubr.f32.gmra.mrb[0].mxu0 %v1590
        %v1657 = vpop.f32.mrb[0].mxu0
        %v1658 = vadd.f32 0.0, %v1657
        %v1659 = vpop.f32.mrb[0].mxu0
        %1660 = vdwg.mxu0
        %v1661 = vmul.f32 %v1658, 0.00390625
        %v1662 = vadd.f32 %v1661, 1e-05
        %v1663 = vrsqrt.pop %v1662
        %v1664 = vlaneseq
        %v1665 = vshrl.u32 %v1664, 7
        %v1666 = vsub.s32 0, %v1665
        %v1667 = vrot.slane %v1663, %v1666
        %v1668 = vmul.f32 %v1580, %v1667
        %v1669 = vmul.f32 %v1581, %v1667
        %v1670 = vmax.f32 %v1668, 0.0
        %v1671 = vmax.f32 %v1669, 0.0
        %v1674 = vrot.slane %v1670, 7
        %v1675 = vrot.slane %v1671, 7
        %v1676 = vsel %vm238, %v1674, %v1675
        %v1680 = vsel %vm238, 0.0, %v1674
        %v1681 = vsel %vm238, %v1675, 0.0
        %s1682 = scalar_lea.vmem [#allocation5], 1152
        %v1683 = vld [vmem:[%s1682] sm:$0xff]
        %v1684 = vld [vmem:[%s1682 + $0x8] sm:$0xff]
        %v1685 = vld [vmem:[%s1682 + $0x10] sm:$0xff]
        %v1686 = vld [vmem:[%s1682 + $0x18] sm:$0xff]
        %v1687 = vld [vmem:[%s1682 + $0x20] sm:$0xff]
        %v1688 = vld [vmem:[%s1682 + $0x28] sm:$0xff]
        %v1689 = vld [vmem:[%s1682 + $0x30] sm:$0xff]
        %v1690 = vld [vmem:[%s1682 + $0x38] sm:$0xff]
        %v1691 = vld [vmem:[%s1682 + $0x40] sm:$0xff]
        %v1692 = vld [vmem:[%s1682 + $0x48] sm:$0xff]
        %v1693 = vld [vmem:[%s1682 + $0x50] sm:$0xff]
        %v1694 = vld [vmem:[%s1682 + $0x58] sm:$0xff]
        %v1695 = vld [vmem:[%s1682 + $0x60] sm:$0xff]
        %v1696 = vld [vmem:[%s1682 + $0x68] sm:$0xff]
        %v1697 = vld [vmem:[%s1682 + $0x70] sm:$0xff]
        %v1698 = vld [vmem:[%s1682 + $0x78] sm:$0xff]
        %s1699 = scalar_lea.vmem [#allocation5], 1280
        %v1700 = vld [vmem:[%s1699] sm:$0xff]
        %v1701 = vld [vmem:[%s1699 + $0x8] sm:$0xff]
        %v1702 = vld [vmem:[%s1699 + $0x10] sm:$0xff]
        %v1703 = vld [vmem:[%s1699 + $0x18] sm:$0xff]
        %v1704 = vld [vmem:[%s1699 + $0x20] sm:$0xff]
        %v1705 = vld [vmem:[%s1699 + $0x28] sm:$0xff]
        %v1706 = vld [vmem:[%s1699 + $0x30] sm:$0xff]
        %v1707 = vld [vmem:[%s1699 + $0x38] sm:$0xff]
        %v1708 = vld [vmem:[%s1699 + $0x40] sm:$0xff]
        %v1709 = vld [vmem:[%s1699 + $0x48] sm:$0xff]
        %v1710 = vld [vmem:[%s1699 + $0x50] sm:$0xff]
        %v1711 = vld [vmem:[%s1699 + $0x58] sm:$0xff]
        %v1712 = vld [vmem:[%s1699 + $0x60] sm:$0xff]
        %v1713 = vld [vmem:[%s1699 + $0x68] sm:$0xff]
        %v1714 = vld [vmem:[%s1699 + $0x70] sm:$0xff]
        %v1715 = vld [vmem:[%s1699 + $0x78] sm:$0xff]
        %v1718 = vrot.slane %v1680, 1
        %v1719 = vrot.slane %v1676, 1
        %v1720 = vsel %vm282, %v1718, %v1719
        %v1721 = vrot.slane %v1681, 1
        %v1722 = vsel %vm282, %v1719, %v1721
        %1725 = vmatprep.subr.mxu0 0.0
        %1726 = vmatpush1.msra.mxu0 %v1700
        %1727 = vmatprep.subr.mxu0 0.0
        %1728 = vmatpush1.msra.mxu0 %v1701
        %1729 = vmatprep.subr.mxu0 0.0
        %1730 = vmatpush1.msra.mxu0 %v1702
        %1731 = vmatprep.subr.mxu0 0.0
        %1732 = vmatpush1.msra.mxu0 %v1703
        %1733 = vmatprep.subr.mxu0 0.0
        %1734 = vmatpush1.msra.mxu0 %v1704
        %1735 = vmatprep.subr.mxu0 0.0
        %1736 = vmatpush1.msra.mxu0 %v1705
        %1737 = vmatprep.subr.mxu0 0.0
        %1738 = vmatpush1.msra.mxu0 %v1706
        %1739 = vmatprep.subr.mxu0 0.0
        %1740 = vmatpush1.msra.mxu0 %v1707
        %1741 = vmatprep.subr.mxu0 0.0
        %1742 = vmatpush1.msra.mxu0 %v1708
        %1743 = vmatprep.subr.mxu0 0.0
        %1744 = vmatpush1.msra.mxu0 %v1709
        %1745 = vmatprep.subr.mxu0 0.0
        %1746 = vmatpush1.msra.mxu0 %v1710
        %1747 = vmatprep.subr.mxu0 0.0
        %1748 = vmatpush1.msra.mxu0 %v1711
        %1749 = vmatprep.subr.mxu0 0.0
        %1750 = vmatpush1.msra.mxu0 %v1712
        %1751 = vmatprep.subr.mxu0 0.0
        %1752 = vmatpush1.msra.mxu0 %v1713
        %1753 = vmatprep.subr.mxu0 0.0
        %1754 = vmatpush1.msra.mxu0 %v1714
        %1755 = vmatprep.subr.mxu0 0.0
        %1756 = vmatpush1.msra.mxu0 %v1715
        %1757 = vmatprep.subr.mxu0 0.0
        %1758 = vmatpush1.msra.mxu0 0.0
        %1759 = vmatprep.subr.mxu0 0.0
        %1760 = vmatpush1.msra.mxu0 0.0
        %1761 = vmatprep.subr.mxu0 0.0
        %1762 = vmatpush1.msra.mxu0 0.0
        %1763 = vmatprep.subr.mxu0 0.0
        %1764 = vmatpush1.msra.mxu0 0.0
        %1765 = vmatprep.subr.mxu0 0.0
        %1766 = vmatpush1.msra.mxu0 0.0
        %1767 = vmatprep.subr.mxu0 0.0
        %1768 = vmatpush1.msra.mxu0 0.0
        %1769 = vmatprep.subr.mxu0 0.0
        %1770 = vmatpush1.msra.mxu0 0.0
        %1771 = vmatprep.subr.mxu0 0.0
        %1772 = vmatpush1.msra.mxu0 0.0
        %1773 = vmatprep.subr.mxu0 0.0
        %1774 = vmatpush1.msra.mxu0 0.0
        %1775 = vmatprep.subr.mxu0 0.0
        %1776 = vmatpush1.msra.mxu0 0.0
        %1777 = vmatprep.subr.mxu0 0.0
        %1778 = vmatpush1.msra.mxu0 0.0
        %1779 = vmatprep.subr.mxu0 0.0
        %1780 = vmatpush1.msra.mxu0 0.0
        %1781 = vmatprep.subr.mxu0 0.0
        %1782 = vmatpush1.msra.mxu0 0.0
        %1783 = vmatprep.subr.mxu0 0.0
        %1784 = vmatpush1.msra.mxu0 0.0
        %1785 = vmatprep.subr.mxu0 0.0
        %1786 = vmatpush1.msra.mxu0 0.0
        %1787 = vmatprep.subr.mxu0 0.0
        %1788 = vmatpush1.msra.mxu0 0.0
        %1789 = vmatprep.mubr.f32.mxu0 0.0
        %1790 = vmatmul.mubr.f32.gmra.mrb[0].mxu0 %v1720
        %v1791 = vpop.f32.mrb[0].mxu0
        %v1792 = vadd.f32 0.0, %v1791
        %v1793 = vpop.f32.mrb[0].mxu0
        %1794 = vmatprep.mubr.f32.mxu0 0.0
        %1795 = vmatmul.mubr.f32.gmra.mrb[0].mxu0 %v1722
        %v1796 = vpop.f32.mrb[0].mxu0
        %v1797 = vadd.f32 0.0, %v1796
        %v1798 = vpop.f32.mrb[0].mxu0
        %1799 = vdwg.mxu0
        %1800 = vmatprep.subr.mxu0 0.0
        %1801 = vmatpush1.msra.mxu0 %v1683
        %1802 = vmatprep.subr.mxu0 0.0
        %1803 = vmatpush1.msra.mxu0 %v1684
        %1804 = vmatprep.subr.mxu0 0.0
        %1805 = vmatpush1.msra.mxu0 %v1685
        %1806 = vmatprep.subr.mxu0 0.0
        %1807 = vmatpush1.msra.mxu0 %v1686
        %1808 = vmatprep.subr.mxu0 0.0
        %1809 = vmatpush1.msra.mxu0 %v1687
        %1810 = vmatprep.subr.mxu0 0.0
        %1811 = vmatpush1.msra.mxu0 %v1688
        %1812 = vmatprep.subr.mxu0 0.0
        %1813 = vmatpush1.msra.mxu0 %v1689
        %1814 = vmatprep.subr.mxu0 0.0
        %1815 = vmatpush1.msra.mxu0 %v1690
        %1816 = vmatprep.subr.mxu0 0.0
        %1817 = vmatpush1.msra.mxu0 %v1691
        %1818 = vmatprep.subr.mxu0 0.0
        %1819 = vmatpush1.msra.mxu0 %v1692
        %1820 = vmatprep.subr.mxu0 0.0
        %1821 = vmatpush1.msra.mxu0 %v1693
        %1822 = vmatprep.subr.mxu0 0.0
        %1823 = vmatpush1.msra.mxu0 %v1694
        %1824 = vmatprep.subr.mxu0 0.0
        %1825 = vmatpush1.msra.mxu0 %v1695
        %1826 = vmatprep.subr.mxu0 0.0
        %1827 = vmatpush1.msra.mxu0 %v1696
        %1828 = vmatprep.subr.mxu0 0.0
        %1829 = vmatpush1.msra.mxu0 %v1697
        %1830 = vmatprep.subr.mxu0 0.0
        %1831 = vmatpush1.msra.mxu0 %v1698
        %1832 = vmatprep.subr.mxu0 0.0
        %1833 = vmatpush1.msra.mxu0 0.0
        %1834 = vmatprep.subr.mxu0 0.0
        %1835 = vmatpush1.msra.mxu0 0.0
        %1836 = vmatprep.subr.mxu0 0.0
        %1837 = vmatpush1.msra.mxu0 0.0
        %1838 = vmatprep.subr.mxu0 0.0
        %1839 = vmatpush1.msra.mxu0 0.0
        %1840 = vmatprep.subr.mxu0 0.0
        %1841 = vmatpush1.msra.mxu0 0.0
        %1842 = vmatprep.subr.mxu0 0.0
        %1843 = vmatpush1.msra.mxu0 0.0
        %1844 = vmatprep.subr.mxu0 0.0
        %1845 = vmatpush1.msra.mxu0 0.0
        %1846 = vmatprep.subr.mxu0 0.0
        %1847 = vmatpush1.msra.mxu0 0.0
        %1848 = vmatprep.subr.mxu0 0.0
        %1849 = vmatpush1.msra.mxu0 0.0
        %1850 = vmatprep.subr.mxu0 0.0
        %1851 = vmatpush1.msra.mxu0 0.0
        %1852 = vmatprep.subr.mxu0 0.0
        %1853 = vmatpush1.msra.mxu0 0.0
        %1854 = vmatprep.subr.mxu0 0.0
        %1855 = vmatpush1.msra.mxu0 0.0
        %1856 = vmatprep.subr.mxu0 0.0
        %1857 = vmatpush1.msra.mxu0 0.0
        %1858 = vmatprep.subr.mxu0 0.0
        %1859 = vmatpush1.msra.mxu0 0.0
        %1860 = vmatprep.subr.mxu0 0.0
        %1861 = vmatpush1.msra.mxu0 0.0
        %1862 = vmatprep.subr.mxu0 0.0
        %1863 = vmatpush1.msra.mxu0 0.0
        %1864 = vmatprep.mubr.f32.mxu0 0.0
        %1865 = vmatmul.mubr.f32.gmra.mrb[0].mxu0 %v1680
        %v1866 = vpop.f32.mrb[0].mxu0
        %v1867 = vadd.f32 %v1792, %v1866
        %v1868 = vpop.f32.mrb[0].mxu0
        %1869 = vmatprep.mubr.f32.mxu0 0.0
        %1870 = vmatmul.mubr.f32.gmra.mrb[0].mxu0 %v1676
        %v1871 = vpop.f32.mrb[0].mxu0
        %v1872 = vadd.f32 %v1797, %v1871
        %v1873 = vpop.f32.mrb[0].mxu0
        %1874 = vdwg.mxu0
        %s1875 = scalar_lea.vmem [#allocation5], 1408
        %v1876 = vld [vmem:[%s1875] sm:$0xff]
        %v1877 = vld [vmem:[%s1875 + $0x8] sm:$0xff]
        %v1878 = vld [vmem:[%s1875 + $0x10] sm:$0xff]
        %v1879 = vld [vmem:[%s1875 + $0x18] sm:$0xff]
        %v1880 = vld [vmem:[%s1875 + $0x20] sm:$0xff]
        %v1881 = vld [vmem:[%s1875 + $0x28] sm:$0xff]
        %v1882 = vld [vmem:[%s1875 + $0x30] sm:$0xff]
        %v1883 = vld [vmem:[%s1875 + $0x38] sm:$0xff]
        %v1884 = vld [vmem:[%s1875 + $0x40] sm:$0xff]
        %v1885 = vld [vmem:[%s1875 + $0x48] sm:$0xff]
        %v1886 = vld [vmem:[%s1875 + $0x50] sm:$0xff]
        %v1887 = vld [vmem:[%s1875 + $0x58] sm:$0xff]
        %v1888 = vld [vmem:[%s1875 + $0x60] sm:$0xff]
        %v1889 = vld [vmem:[%s1875 + $0x68] sm:$0xff]
        %v1890 = vld [vmem:[%s1875 + $0x70] sm:$0xff]
        %v1891 = vld [vmem:[%s1875 + $0x78] sm:$0xff]
        %v1892 = vrot.slane %v1680, 2
        %v1893 = vrot.slane %v1676, 2
        %v1894 = vsel %vm457, %v1892, %v1893
        %v1895 = vrot.slane %v1681, 2
        %v1896 = vsel %vm457, %v1893, %v1895
        %1899 = vmatprep.subr.mxu0 0.0
        %1900 = vmatpush1.msra.mxu0 %v1876
        %1901 = vmatprep.subr.mxu0 0.0
        %1902 = vmatpush1.msra.mxu0 %v1877
        %1903 = vmatprep.subr.mxu0 0.0
        %1904 = vmatpush1.msra.mxu0 %v1878
        %1905 = vmatprep.subr.mxu0 0.0
        %1906 = vmatpush1.msra.mxu0 %v1879
        %1907 = vmatprep.subr.mxu0 0.0
        %1908 = vmatpush1.msra.mxu0 %v1880
        %1909 = vmatprep.subr.mxu0 0.0
        %1910 = vmatpush1.msra.mxu0 %v1881
        %1911 = vmatprep.subr.mxu0 0.0
        %1912 = vmatpush1.msra.mxu0 %v1882
        %1913 = vmatprep.subr.mxu0 0.0
        %1914 = vmatpush1.msra.mxu0 %v1883
        %1915 = vmatprep.subr.mxu0 0.0
        %1916 = vmatpush1.msra.mxu0 %v1884
        %1917 = vmatprep.subr.mxu0 0.0
        %1918 = vmatpush1.msra.mxu0 %v1885
        %1919 = vmatprep.subr.mxu0 0.0
        %1920 = vmatpush1.msra.mxu0 %v1886
        %1921 = vmatprep.subr.mxu0 0.0
        %1922 = vmatpush1.msra.mxu0 %v1887
        %1923 = vmatprep.subr.mxu0 0.0
        %1924 = vmatpush1.msra.mxu0 %v1888
        %1925 = vmatprep.subr.mxu0 0.0
        %1926 = vmatpush1.msra.mxu0 %v1889
        %1927 = vmatprep.subr.mxu0 0.0
        %1928 = vmatpush1.msra.mxu0 %v1890
        %1929 = vmatprep.subr.mxu0 0.0
        %1930 = vmatpush1.msra.mxu0 %v1891
        %1931 = vmatprep.subr.mxu0 0.0
        %1932 = vmatpush1.msra.mxu0 0.0
        %1933 = vmatprep.subr.mxu0 0.0
        %1934 = vmatpush1.msra.mxu0 0.0
        %1935 = vmatprep.subr.mxu0 0.0
        %1936 = vmatpush1.msra.mxu0 0.0
        %1937 = vmatprep.subr.mxu0 0.0
        %1938 = vmatpush1.msra.mxu0 0.0
        %1939 = vmatprep.subr.mxu0 0.0
        %1940 = vmatpush1.msra.mxu0 0.0
        %1941 = vmatprep.subr.mxu0 0.0
        %1942 = vmatpush1.msra.mxu0 0.0
        %1943 = vmatprep.subr.mxu0 0.0
        %1944 = vmatpush1.msra.mxu0 0.0
        %1945 = vmatprep.subr.mxu0 0.0
        %1946 = vmatpush1.msra.mxu0 0.0
        %1947 = vmatprep.subr.mxu0 0.0
        %1948 = vmatpush1.msra.mxu0 0.0
        %1949 = vmatprep.subr.mxu0 0.0
        %1950 = vmatpush1.msra.mxu0 0.0
        %1951 = vmatprep.subr.mxu0 0.0
        %1952 = vmatpush1.msra.mxu0 0.0
        %1953 = vmatprep.subr.mxu0 0.0
        %1954 = vmatpush1.msra.mxu0 0.0
        %1955 = vmatprep.subr.mxu0 0.0
        %1956 = vmatpush1.msra.mxu0 0.0
        %1957 = vmatprep.subr.mxu0 0.0
        %1958 = vmatpush1.msra.mxu0 0.0
        %1959 = vmatprep.subr.mxu0 0.0
        %1960 = vmatpush1.msra.mxu0 0.0
        %1961 = vmatprep.subr.mxu0 0.0
        %1962 = vmatpush1.msra.mxu0 0.0
        %1963 = vmatprep.mubr.f32.mxu0 0.0
        %1964 = vmatmul.mubr.f32.gmra.mrb[0].mxu0 %v1894
        %v1965 = vpop.f32.mrb[0].mxu0
        %v1966 = vadd.f32 0.0, %v1965
        %v1967 = vpop.f32.mrb[0].mxu0
        %1968 = vmatprep.mubr.f32.mxu0 0.0
        %1969 = vmatmul.mubr.f32.gmra.mrb[0].mxu0 %v1896
        %v1970 = vpop.f32.mrb[0].mxu0
        %v1971 = vadd.f32 0.0, %v1970
        %v1972 = vpop.f32.mrb[0].mxu0
        %1973 = vdwg.mxu0
        %v1974 = vadd.f32 %v1867, %v1966
        %v1975 = vadd.f32 %v1872, %v1971
        %v1976 = vadd.f32 %v1974, %v1975
        %v1977 = vrot.slane %v1976, 4
        %v1978 = vadd.f32 %v1976, %v1977
        %v1979 = vrot.slane %v1978, 2
        %v1980 = vadd.f32 %v1978, %v1979
        %v1981 = vrot.slane %v1980, 1
        %v1982 = vadd.f32 %v1980, %v1981
        %1983 = vmatprep.subr.mxu0 0.0
        %1984 = vmatpush1.msra.mxu0 %v218
        %1985 = vmatprep.subr.mxu0 0.0
        %1986 = vmatpush1.msra.mxu0 %v219
        %1987 = vmatprep.subr.mxu0 0.0
        %1988 = vmatpush1.msra.mxu0 %v220
        %1989 = vmatprep.subr.mxu0 0.0
        %1990 = vmatpush1.msra.mxu0 %v221
        %1991 = vmatprep.subr.mxu0 0.0
        %1992 = vmatpush1.msra.mxu0 %v222
        %1993 = vmatprep.subr.mxu0 0.0
        %1994 = vmatpush1.msra.mxu0 %v223
        %1995 = vmatprep.subr.mxu0 0.0
        %1996 = vmatpush1.msra.mxu0 %v224
        %1997 = vmatprep.subr.mxu0 0.0
        %1998 = vmatpush1.msra.mxu0 %v225
        %1999 = vmatprep.subr.mxu0 0.0
        %2000 = vmatpush1.msra.mxu0 %v226
        %2001 = vmatprep.subr.mxu0 0.0
        %2002 = vmatpush1.msra.mxu0 %v227
        %2003 = vmatprep.subr.mxu0 0.0
        %2004 = vmatpush1.msra.mxu0 %v228
        %2005 = vmatprep.subr.mxu0 0.0
        %2006 = vmatpush1.msra.mxu0 %v229
        %2007 = vmatprep.subr.mxu0 0.0
        %2008 = vmatpush1.msra.mxu0 %v230
        %2009 = vmatprep.subr.mxu0 0.0
        %2010 = vmatpush1.msra.mxu0 %v231
        %2011 = vmatprep.subr.mxu0 0.0
        %2012 = vmatpush1.msra.mxu0 %v232
        %2013 = vmatprep.subr.mxu0 0.0
        %2014 = vmatpush1.msra.mxu0 %v233
        %2015 = vmatprep.subr.mxu0 0.0
        %2016 = vmatpush1.msra.mxu0 0.0
        %2017 = vmatprep.subr.mxu0 0.0
        %2018 = vmatpush1.msra.mxu0 0.0
        %2019 = vmatprep.subr.mxu0 0.0
        %2020 = vmatpush1.msra.mxu0 0.0
        %2021 = vmatprep.subr.mxu0 0.0
        %2022 = vmatpush1.msra.mxu0 0.0
        %2023 = vmatprep.subr.mxu0 0.0
        %2024 = vmatpush1.msra.mxu0 0.0
        %2025 = vmatprep.subr.mxu0 0.0
        %2026 = vmatpush1.msra.mxu0 0.0
        %2027 = vmatprep.subr.mxu0 0.0
        %2028 = vmatpush1.msra.mxu0 0.0
        %2029 = vmatprep.subr.mxu0 0.0
        %2030 = vmatpush1.msra.mxu0 0.0
        %2031 = vmatprep.subr.mxu0 0.0
        %2032 = vmatpush1.msra.mxu0 0.0
        %2033 = vmatprep.subr.mxu0 0.0
        %2034 = vmatpush1.msra.mxu0 0.0
        %2035 = vmatprep.subr.mxu0 0.0
        %2036 = vmatpush1.msra.mxu0 0.0
        %2037 = vmatprep.subr.mxu0 0.0
        %2038 = vmatpush1.msra.mxu0 0.0
        %2039 = vmatprep.subr.mxu0 0.0
        %2040 = vmatpush1.msra.mxu0 0.0
        %2041 = vmatprep.subr.mxu0 0.0
        %2042 = vmatpush1.msra.mxu0 0.0
        %2043 = vmatprep.subr.mxu0 0.0
        %2044 = vmatpush1.msra.mxu0 0.0
        %2045 = vmatprep.subr.mxu0 0.0
        %2046 = vmatpush1.msra.mxu0 0.0
        %2047 = vmatprep.mubr.f32.mxu0 0.0
        %2048 = vmatmul.mubr.f32.gmra.mrb[0].mxu0 %v1982
        %v2049 = vpop.f32.mrb[0].mxu0
        %v2050 = vadd.f32 0.0, %v2049
        %v2051 = vpop.f32.mrb[0].mxu0
        %2052 = vdwg.mxu0
        %v2053 = vmul.f32 %v2050, 0.00390625
        %v2054 = vlaneseq
        %v2055 = vshrl.u32 %v2054, 7
        %v2056 = vsub.s32 0, %v2055
        %v2057 = vrot.slane %v2053, %v2056
        %v2058 = vsub.f32 %v1974, %v2057
        %v2059 = vsub.f32 %v1975, %v2057
        %v2060 = vmul.f32 %v2058, %v2058
        %v2061 = vmul.f32 %v2059, %v2059
        %v2062 = vadd.f32 %v2060, %v2061
        %v2063 = vrot.slane %v2062, 4
        %v2064 = vadd.f32 %v2062, %v2063
        %v2065 = vrot.slane %v2064, 2
        %v2066 = vadd.f32 %v2064, %v2065
        %v2067 = vrot.slane %v2066, 1
        %v2068 = vadd.f32 %v2066, %v2067
        %2069 = vmatprep.subr.mxu0 0.0
        %2070 = vmatpush1.msra.mxu0 %v218
        %2071 = vmatprep.subr.mxu0 0.0
        %2072 = vmatpush1.msra.mxu0 %v219
        %2073 = vmatprep.subr.mxu0 0.0
        %2074 = vmatpush1.msra.mxu0 %v220
        %2075 = vmatprep.subr.mxu0 0.0
        %2076 = vmatpush1.msra.mxu0 %v221
        %2077 = vmatprep.subr.mxu0 0.0
        %2078 = vmatpush1.msra.mxu0 %v222
        %2079 = vmatprep.subr.mxu0 0.0
        %2080 = vmatpush1.msra.mxu0 %v223
        %2081 = vmatprep.subr.mxu0 0.0
        %2082 = vmatpush1.msra.mxu0 %v224
        %2083 = vmatprep.subr.mxu0 0.0
        %2084 = vmatpush1.msra.mxu0 %v225
        %2085 = vmatprep.subr.mxu0 0.0
        %2086 = vmatpush1.msra.mxu0 %v226
        %2087 = vmatprep.subr.mxu0 0.0
        %2088 = vmatpush1.msra.mxu0 %v227
        %2089 = vmatprep.subr.mxu0 0.0
        %2090 = vmatpush1.msra.mxu0 %v228
        %2091 = vmatprep.subr.mxu0 0.0
        %2092 = vmatpush1.msra.mxu0 %v229
        %2093 = vmatprep.subr.mxu0 0.0
        %2094 = vmatpush1.msra.mxu0 %v230
        %2095 = vmatprep.subr.mxu0 0.0
        %2096 = vmatpush1.msra.mxu0 %v231
        %2097 = vmatprep.subr.mxu0 0.0
        %2098 = vmatpush1.msra.mxu0 %v232
        %2099 = vmatprep.subr.mxu0 0.0
        %2100 = vmatpush1.msra.mxu0 %v233
        %2101 = vmatprep.subr.mxu0 0.0
        %2102 = vmatpush1.msra.mxu0 0.0
        %2103 = vmatprep.subr.mxu0 0.0
        %2104 = vmatpush1.msra.mxu0 0.0
        %2105 = vmatprep.subr.mxu0 0.0
        %2106 = vmatpush1.msra.mxu0 0.0
        %2107 = vmatprep.subr.mxu0 0.0
        %2108 = vmatpush1.msra.mxu0 0.0
        %2109 = vmatprep.subr.mxu0 0.0
        %2110 = vmatpush1.msra.mxu0 0.0
        %2111 = vmatprep.subr.mxu0 0.0
        %2112 = vmatpush1.msra.mxu0 0.0
        %2113 = vmatprep.subr.mxu0 0.0
        %2114 = vmatpush1.msra.mxu0 0.0
        %2115 = vmatprep.subr.mxu0 0.0
        %2116 = vmatpush1.msra.mxu0 0.0
        %2117 = vmatprep.subr.mxu0 0.0
        %2118 = vmatpush1.msra.mxu0 0.0
        %2119 = vmatprep.subr.mxu0 0.0
        %2120 = vmatpush1.msra.mxu0 0.0
        %2121 = vmatprep.subr.mxu0 0.0
        %2122 = vmatpush1.msra.mxu0 0.0
        %2123 = vmatprep.subr.mxu0 0.0
        %2124 = vmatpush1.msra.mxu0 0.0
        %2125 = vmatprep.subr.mxu0 0.0
        %2126 = vmatpush1.msra.mxu0 0.0
        %2127 = vmatprep.subr.mxu0 0.0
        %2128 = vmatpush1.msra.mxu0 0.0
        %2129 = vmatprep.subr.mxu0 0.0
        %2130 = vmatpush1.msra.mxu0 0.0
        %2131 = vmatprep.subr.mxu0 0.0
        %2132 = vmatpush1.msra.mxu0 0.0
        %2133 = vmatprep.mubr.f32.mxu0 0.0
        %2134 = vmatmul.mubr.f32.gmra.mrb[0].mxu0 %v2068
        %v2135 = vpop.f32.mrb[0].mxu0
        %v2136 = vadd.f32 0.0, %v2135
        %v2137 = vpop.f32.mrb[0].mxu0
        %2138 = vdwg.mxu0
        %v2139 = vmul.f32 %v2136, 0.00390625
        %v2140 = vadd.f32 %v2139, 1e-05
        %v2141 = vrsqrt.pop %v2140
        %v2142 = vlaneseq
        %v2143 = vshrl.u32 %v2142, 7
        %v2144 = vsub.s32 0, %v2143
        %v2145 = vrot.slane %v2141, %v2144
        %v2146 = vmul.f32 %v2058, %v2145
        %v2147 = vmul.f32 %v2059, %v2145
        %v2148 = vadd.f32 %v2146, %v1192
        %v2149 = vadd.f32 %v2147, %v1193
        %2150 = vst [vmem:[%s217] sm:$0xff] %v2148
        %2151 = vst [vmem:[%s217 + $0x8] sm:$0xff] %v2149
        %s2152 = sand.u32 %s97, 1
        %s2153 = scalar_lea.sflag [#allocation4], %s2152
        %s2154 = sand.u32 %s97, 1
        %s2155 = smul.addr %s2154, 16
        %s2156 = scalar_lea.vmem [#allocation8], %s2155
        // Predicated region
        $region45: #{tpu_custom_call.1} parent=31 // pred_check
          %p2157 = pneg %p107
        $region46: #{tpu_custom_call.1} parent=31 // pred_check_branch
          %2159 = sbr.rel (%p2157) target = $region48
        $region47: #{tpu_custom_call.1} parent=31 // pred_region
          %s2161 = ssub.s32 256, 256
          %2162 = vsyncadd %s2153, %s2161
          %s2163 = smul.addr %s21, 2
          %s2164 = smul.addr %s2163, 128
          %s2165 = scalar_lea.hbm %s3, %s2164
          %s2166 = sshll.u32 %s2156, 4
          %s2167 = int_to_ptr.vmem [resolvable:$true] %s2166
          %2172 = dma.vmem_to_hbm [thread:$0]  %s2167, 256, %s2165, %s2153, 128, 128, 8
        $region48: #{tpu_custom_call.1} parent=31 // pred_fallthru
          _
      $region32: #{tpu_custom_call.1} parent=5 // pred_fallthru
        _
      %p2173 = scmp.le.s32.totalorder 2, %s16
      // Predicated region
      $region49: #{tpu_custom_call.1} parent=5 // pred_check
        %p2174 = pneg %p2173
      $region50: #{tpu_custom_call.1} parent=5 // pred_check_branch
        %2176 = sbr.rel (%p2174) target = $region52
      $region51: #{tpu_custom_call.1} parent=5 // pred_region
        %s2177 = ssub.s32 %s16, 2
        // Predicated region
        $region53: #{tpu_custom_call.1} parent=51 // pred_check
          %p2178 = pneg %p113
        $region54: #{tpu_custom_call.1} parent=51 // pred_check_branch
          %2180 = sbr.rel (%p2178) target = $region56
        $region55: #{tpu_custom_call.1} parent=51 // pred_region
          %s2181 = sand.u32 %s98, 1
          %s2182 = scalar_lea.sflag [#allocation4], %s2181
          %s2183 = sand.u32 %s98, 1
          %s2184 = smul.addr %s2183, 16
          %s2185 = scalar_lea.vmem [#allocation8], %s2184
          %2186 = dma.done %s2182, 256
        $region56: #{tpu_custom_call.1} parent=51 // pred_fallthru
          _
      $region52: #{tpu_custom_call.1} parent=5 // pred_fallthru
        _
    $region6: #{tpu_custom_call.1} parent=1 // loop_footer
      %s20 = sadd.s32 1, %s16
    $region7: #{tpu_custom_call.1} parent=1 // loop_footer_branch
      %15 = sbr.rel target = $region3
    $region8: #{tpu_custom_call.1} parent=1 // loop_exit
      _
    %2187 = vsyncpa [#allocation3], 1
    %s2188 = scalar_lea.sflag [#allocation3], 1
    %2189 = vsyncpa %s2188, 1
    %2190 = vsyncpa [#allocation6], 1
    %2191 = vsyncpa [#allocation4], 1
    %s2192 = scalar_lea.sflag [#allocation4], 1
    %2193 = vsyncpa %s2192, 1

</llo_original>
